<compile_context>
chip_gen: v5e
topology: v5e:2x2
jax: 0.10.0
libtpu: 0.0.40
codegen_flags: <defaults>
</compile_context>

<pallas_src>
import functools

import numpy as np
import jax
import jax.numpy as jnp
from jax.experimental import pallas as pl
from jax.experimental.pallas import tpu as pltpu


def _round_up(x, m):
    return ((x + m - 1) // m) * m


# ----------------------------------------------------------------------------
# Pallas kernels
# ----------------------------------------------------------------------------

def _front_kernel(x_ref, rw_ref, rb_ref, w1_ref, b1_ref, w2_ref, b2_ref,
                  wsh_ref, bsh_ref, logits_ref, xnorm_ref, shared_ref, *, L, eps):
    """Fused: gate MLP (on raw x) + RevIN 'norm' + shared expert, one row tile."""
    x = x_ref[...]                                           # (TR, L_pad), zero padded

    # --- gate encoder: logits = relu(x @ W1 + b1) @ W2 + b2 (on raw, un-normalized x)
    h = jnp.dot(x, w1_ref[...], preferred_element_type=jnp.float32) + b1_ref[...]
    h = jnp.maximum(h, 0.0)
    logits_ref[...] = (jnp.dot(h, w2_ref[...], preferred_element_type=jnp.float32)
                       + b2_ref[...])

    # --- RevIN 'norm': per-row mean/var over the (unpadded) time axis, then affine
    col = jax.lax.broadcasted_iota(jnp.int32, x.shape, 1)
    valid = (col < L).astype(jnp.float32)
    inv_L = 1.0 / float(L)
    mean = jnp.sum(x, axis=-1, keepdims=True) * inv_L        # padding cols are zero
    diff = (x - mean) * valid
    var = jnp.sum(diff * diff, axis=-1, keepdims=True) * inv_L   # unbiased=False
    inv = jax.lax.rsqrt(var + eps)
    xn = diff * (inv * rw_ref[...]) + rb_ref[...] * valid
    xnorm_ref[...] = xn

    # --- shared expert (decomposition folded into a single effective weight)
    shared_ref[...] = (jnp.dot(xn, wsh_ref[...], preferred_element_type=jnp.float32)
                       + bsh_ref[...])


def _lin_expert_kernel(x_ref, w_ref, b_ref, g_ref, o_ref):
    """Decomposition-linear expert with A folded into W_eff; gate-weighted output."""
    out = (jnp.dot(x_ref[...], w_ref[...], preferred_element_type=jnp.float32)
           + b_ref[...])
    o_ref[...] = out * g_ref[...]                            # gate==0 for padded slots


def _attn_expert_kernel(x_ref, win_ref, bin_ref, wqkv_ref, wo_ref, bo_ref,
                        g_ref, valid_ref, o_ref, *, n_heads, dh, dh_pad):
    """Attention expert: seq_len->d_model projection, MHA over the dispatched rows
    (padded slots masked out of the keys), output projection; gate-weighted."""
    h = (jnp.dot(x_ref[...], win_ref[...], preferred_element_type=jnp.float32)
         + bin_ref[...])                                     # (cap, D_pad)
    qkv = jnp.dot(h, wqkv_ref[...], preferred_element_type=jnp.float32)
    wo = wo_ref[...]
    HD = n_heads * dh_pad
    scale = dh ** -0.5
    key_bias = (valid_ref[...] - 1.0) * 1e9                  # 0 for valid, -1e9 for pad

    out = bo_ref[...]                                        # (1, D_pad) -> broadcasts
    for hd in range(n_heads):                                # lane-aligned 128-wide head slices
        q = qkv[:, hd * dh_pad:(hd + 1) * dh_pad]
        kk = qkv[:, HD + hd * dh_pad:HD + (hd + 1) * dh_pad]
        v = qkv[:, 2 * HD + hd * dh_pad:2 * HD + (hd + 1) * dh_pad]
        s = jax.lax.dot_general(q, kk, (((1,), (1,)), ((), ())),
                                preferred_element_type=jnp.float32) * scale
        s = s + key_bias
        s = s - jnp.max(s, axis=-1, keepdims=True)
        p = jnp.exp(s)
        p = p * pl.reciprocal(jnp.sum(p, axis=-1, keepdims=True), approx=True)
        ctx = jnp.dot(p, v, preferred_element_type=jnp.float32)
        out = out + jnp.dot(ctx, wo[hd * dh_pad:(hd + 1) * dh_pad, :],
                            preferred_element_type=jnp.float32)
    o_ref[...] = out * g_ref[...]


# ----------------------------------------------------------------------------
# Parameter setup (host-side, done once)
# ----------------------------------------------------------------------------

def moving_avg_matrix(L, ks):
    """Linear operator of Autoformer-style moving_avg (replicate-pad AvgPool1d)."""
    pad = (ks - 1) // 2
    A = np.zeros((L, L), dtype=np.float32)
    for t in range(L):
        for j in range(ks):
            src = min(max(t + j - pad, 0), L - 1)
            A[src, t] += 1.0 / ks
    return jnp.asarray(A)


def init_params(key, cfg):
    L, D, E, V = cfg["seq_len"], cfg["d_model"], cfg["num_experts"], cfg["enc_in"]
    keys = iter(jax.random.split(key, 64))

    def w(shape, scale=0.1):
        return scale * jax.random.normal(next(keys), shape, jnp.float32)

    params = {}
    params["gate"] = (w((L, D)), w((D,)), w((D, E)), w((E,)))
    kernel_sizes = [13 + 12 * i for i in range(E // 2)]
    params["linear_experts"] = [
        dict(A=moving_avg_matrix(L, ks), ws=w((L, D)), wt=w((L, D)),
             b=w((D,)) + w((D,)))                       # bias_seasonal + bias_trend
        for ks in kernel_sizes
    ]
    params["attn_experts"] = [
        dict(win=w((L, D)), bin=w((D,)), wq=w((D, D)), wk=w((D, D)),
             wv=w((D, D)), wo=w((D, D)), bo=w((D,)))
        for _ in range(E - len(kernel_sizes))
    ]
    params["shared_expert"] = dict(A=moving_avg_matrix(L, 25), ws=w((L, D)),
                                   wt=w((L, D)), b=w((D,)))
    params["revin_w"] = jnp.ones((V,), jnp.float32)     # RevIN affine init
    params["revin_b"] = jnp.zeros((V,), jnp.float32)
    return params


def prepare_params(params, cfg):
    """Fold the moving-average operator into effective weights, pad every feature
    dim to 128 lanes, stack per-expert weights for grid-indexed BlockSpecs."""
    L, D, E, H = cfg["seq_len"], cfg["d_model"], cfg["num_experts"], cfg["n_heads"]
    dh = D // H
    L_pad, D_pad, E_pad = _round_up(L, 128), _round_up(D, 128), _round_up(E, 128)
    dh_pad = _round_up(dh, 128)
    HD = H * dh_pad

    def pad2(a, r, c):
        out = jnp.zeros((r, c), jnp.float32)
        return out.at[:a.shape[0], :a.shape[1]].set(a)

    pp = {}
    w1, b1, w2, b2 = params["gate"]
    pp["w1"] = pad2(w1, L_pad, D_pad)
    pp["b1"] = pad2(b1.reshape(1, -1), 1, D_pad)
    pp["w2"] = pad2(w2, D_pad, E_pad)
    pp["b2"] = pad2(b2.reshape(1, -1), 1, E_pad)

    ps = params["shared_expert"]
    wsh_eff = ps["ws"] + ps["A"] @ (ps["wt"] - ps["ws"])     # fold decomposition
    pp["wsh"] = pad2(wsh_eff, L_pad, D_pad)
    pp["bsh"] = pad2(ps["b"].reshape(1, -1), 1, D_pad)

    if params["linear_experts"]:
        w_lin, b_lin = [], []
        for pe in params["linear_experts"]:
            w_eff = pe["ws"] + pe["A"] @ (pe["wt"] - pe["ws"])
            w_lin.append(pad2(w_eff, L_pad, D_pad))
            b_lin.append(pad2(pe["b"].reshape(1, -1), 1, D_pad))
        pp["w_lin"] = jnp.stack(w_lin)
        pp["b_lin"] = jnp.stack(b_lin)

    if params["attn_experts"]:
        def head_cols(wm):                                   # (D,D) -> (D_pad, H*dh_pad)
            out = jnp.zeros((D_pad, HD), jnp.float32)
            for h in range(H):
                out = out.at[:D, h * dh_pad:h * dh_pad + dh].set(wm[:, h * dh:(h + 1) * dh])
            return out

        win, bins, wqkv, wo, bo = [], [], [], [], []
        for pa in params["attn_experts"]:
            win.append(pad2(pa["win"], L_pad, D_pad))
            bins.append(pad2(pa["bin"].reshape(1, -1), 1, D_pad))
            wqkv.append(jnp.concatenate(
                [head_cols(pa["wq"]), head_cols(pa["wk"]), head_cols(pa["wv"])], axis=1))
            wo_p = jnp.zeros((HD, D_pad), jnp.float32)
            for h in range(H):
                wo_p = wo_p.at[h * dh_pad:h * dh_pad + dh, :D].set(
                    pa["wo"][h * dh:(h + 1) * dh, :])
            wo.append(wo_p)
            bo.append(pad2(pa["bo"].reshape(1, -1), 1, D_pad))
        pp["win"] = jnp.stack(win)
        pp["bin"] = jnp.stack(bins)
        pp["wqkv"] = jnp.stack(wqkv)
        pp["wo"] = jnp.stack(wo)
        pp["bo"] = jnp.stack(bo)

    pp["revin_w"] = params["revin_w"]
    pp["revin_b"] = params["revin_b"]
    return pp


# ----------------------------------------------------------------------------
# Forward pass (fully device-side, jitted)
# ----------------------------------------------------------------------------

def make_cluster_forward(cfg, loss_coef=1.0):
    L, D, E = cfg["seq_len"], cfg["d_model"], cfg["num_experts"]
    H, V, k, cf = cfg["n_heads"], cfg["enc_in"], cfg["k"], cfg["capacity_factor"]
    n_lin = E // 2
    n_att = E - n_lin
    dh = D // H
    L_pad, D_pad, E_pad = _round_up(L, 128), _round_up(D, 128), _round_up(E, 128)
    dh_pad = _round_up(dh, 128)
    HD = H * dh_pad

    def forward(x, pp):
        N = x.shape[0]
        x2d = x[..., 0]                                      # (N, L), channel-independent

        TR = 256 if N >= 256 else _round_up(N, 8)            # row tile (parallel axis)
        N_pad = _round_up(N, TR)

        x_pad = jnp.zeros((N_pad, L_pad), jnp.float32).at[:N, :L].set(x2d)
        v_idx = jnp.arange(N) % V                            # CI rearrange: var = row % n_vars
        rw = jnp.zeros((N_pad, 1), jnp.float32).at[:N, 0].set(pp["revin_w"][v_idx])
        rb = jnp.zeros((N_pad, 1), jnp.float32).at[:N, 0].set(pp["revin_b"][v_idx])

        cparams = pltpu.CompilerParams(dimension_semantics=("parallel",),
                                       vmem_limit_bytes=32 * 1024 * 1024)

        # ----- fused gate MLP + RevIN + shared expert (one pass over x) -----
        logits_pad, x_norm, shared_pad = pl.pallas_call(
            functools.partial(_front_kernel, L=L, eps=1e-5),
            out_shape=(jax.ShapeDtypeStruct((N_pad, E_pad), jnp.float32),
                       jax.ShapeDtypeStruct((N_pad, L_pad), jnp.float32),
                       jax.ShapeDtypeStruct((N_pad, D_pad), jnp.float32)),
            grid=(N_pad // TR,),
            in_specs=[
                pl.BlockSpec((TR, L_pad), lambda i: (i, 0)),
                pl.BlockSpec((TR, 1), lambda i: (i, 0)),
                pl.BlockSpec((TR, 1), lambda i: (i, 0)),
                pl.BlockSpec((L_pad, D_pad), lambda i: (0, 0)),
                pl.BlockSpec((1, D_pad), lambda i: (0, 0)),
                pl.BlockSpec((D_pad, E_pad), lambda i: (0, 0)),
                pl.BlockSpec((1, E_pad), lambda i: (0, 0)),
                pl.BlockSpec((L_pad, D_pad), lambda i: (0, 0)),
                pl.BlockSpec((1, D_pad), lambda i: (0, 0)),
            ],
            out_specs=(pl.BlockSpec((TR, E_pad), lambda i: (i, 0)),
                       pl.BlockSpec((TR, L_pad), lambda i: (i, 0)),
                       pl.BlockSpec((TR, D_pad), lambda i: (i, 0))),
            compiler_params=cparams,
        )(x_pad, rw, rb, pp["w1"], pp["b1"], pp["w2"], pp["b2"], pp["wsh"], pp["bsh"])

        logits = logits_pad[:N, :E]
        shared_out = shared_pad[:N]                          # (N, D_pad)

        # ----- noisy_top_k_gating (eval: noisy_logits == clean_logits) -----
        softmax_logits = jax.nn.softmax(logits, axis=-1)
        log_z = jax.nn.logsumexp(softmax_logits, axis=-1)
        z_loss = jnp.sum(jnp.square(log_z)) / N

        m = min(k + 1, E)
        top_vals, top_idx = jax.lax.top_k(softmax_logits, m)
        top_k_vals, top_k_idx = top_vals[:, :k], top_idx[:, :k]
        top_k_gates = top_k_vals / (jnp.sum(top_k_vals, axis=1, keepdims=True) + 1e-6)
        gates = jnp.zeros((N, E), jnp.float32).at[
            jnp.arange(N)[:, None], top_k_idx].set(top_k_gates)

        # load-balancing loss (mechanical copy of the torch code)
        routing_weights = jax.nn.softmax(softmax_logits, axis=-1)
        _, selected = jax.lax.top_k(routing_weights, k)
        expert_mask = jax.nn.one_hot(selected.reshape(-1), E)
        expert_mask = jnp.max(expert_mask, axis=-2)
        tokens_per_expert = jnp.mean(expert_mask, axis=0)
        router_prob_per_expert = jnp.mean(routing_weights, axis=0)
        load_balance_loss = jnp.sum(tokens_per_expert * router_prob_per_expert[..., None]) * E
        total_loss = z_loss * 0.2 + loss_coef * load_balance_loss

        # ----- capacity-limited SparseDispatcher, device-side -----
        capacity = int(cf * N // E)
        cap_pad = _round_up(max(capacity, 1), 8)

        sel = gates > 0
        seli = sel.astype(jnp.int32)
        rank = jnp.cumsum(seli, axis=0) - seli               # exclusive row-order rank
        keep = sel & (rank < capacity)                       # first `capacity` rows / expert
        masked_gates = gates * keep.astype(gates.dtype)

        order = jnp.argsort(jnp.where(keep, 0, 1).astype(jnp.int32), axis=0, stable=True)
        take = min(cap_pad, N)
        idx_tbl = order[:take].T                             # (E, take) row indices
        g_tbl = jnp.take_along_axis(masked_gates, order, axis=0)[:take].T
        v_tbl = jnp.take_along_axis(keep.astype(jnp.float32), order, axis=0)[:take].T
        if take < cap_pad:
            padn = cap_pad - take
            idx_tbl = jnp.pad(idx_tbl, ((0, 0), (0, padn)))
            g_tbl = jnp.pad(g_tbl, ((0, 0), (0, padn)))
            v_tbl = jnp.pad(v_tbl, ((0, 0), (0, padn)))

        x_disp = x_norm[idx_tbl]                             # (E, cap_pad, L_pad) gather

        expert_parts = []
        # ----- decomposition-linear experts -----
        if n_lin > 0:
            g_lin = g_tbl[:n_lin].reshape(n_lin, cap_pad, 1)
            lin_out = pl.pallas_call(
                _lin_expert_kernel,
                out_shape=jax.ShapeDtypeStruct((n_lin, cap_pad, D_pad), jnp.float32),
                grid=(n_lin,),
                in_specs=[
                    pl.BlockSpec((None, cap_pad, L_pad), lambda e: (e, 0, 0)),
                    pl.BlockSpec((None, L_pad, D_pad), lambda e: (e, 0, 0)),
                    pl.BlockSpec((None, 1, D_pad), lambda e: (e, 0, 0)),
                    pl.BlockSpec((None, cap_pad, 1), lambda e: (e, 0, 0)),
                ],
                out_specs=pl.BlockSpec((None, cap_pad, D_pad), lambda e: (e, 0, 0)),
                compiler_params=cparams,
            )(x_disp[:n_lin], pp["w_lin"], pp["b_lin"], g_lin)
            expert_parts.append(lin_out)

        # ----- attention experts -----
        if n_att > 0:
            g_att = g_tbl[n_lin:].reshape(n_att, cap_pad, 1)
            valid_att = v_tbl[n_lin:].reshape(n_att, 1, cap_pad)
            att_out = pl.pallas_call(
                functools.partial(_attn_expert_kernel, n_heads=H, dh=dh, dh_pad=dh_pad),
                out_shape=jax.ShapeDtypeStruct((n_att, cap_pad, D_pad), jnp.float32),
                grid=(n_att,),
                in_specs=[
                    pl.BlockSpec((None, cap_pad, L_pad), lambda e: (e, 0, 0)),
                    pl.BlockSpec((None, L_pad, D_pad), lambda e: (e, 0, 0)),
                    pl.BlockSpec((None, 1, D_pad), lambda e: (e, 0, 0)),
                    pl.BlockSpec((None, D_pad, 3 * HD), lambda e: (e, 0, 0)),
                    pl.BlockSpec((None, HD, D_pad), lambda e: (e, 0, 0)),
                    pl.BlockSpec((None, 1, D_pad), lambda e: (e, 0, 0)),
                    pl.BlockSpec((None, cap_pad, 1), lambda e: (e, 0, 0)),
                    pl.BlockSpec((None, 1, cap_pad), lambda e: (e, 0, 0)),
                ],
                out_specs=pl.BlockSpec((None, cap_pad, D_pad), lambda e: (e, 0, 0)),
                compiler_params=cparams,
            )(x_disp[n_lin:], pp["win"], pp["bin"], pp["wqkv"], pp["wo"], pp["bo"],
              g_att, valid_att)
            expert_parts.append(att_out)

        # ----- combine: shared expert + gate-weighted scatter-add of expert outputs -----
        expert_out = jnp.concatenate(expert_parts, axis=0)   # (E, cap_pad, D_pad)
        combined = shared_out.at[idx_tbl.reshape(-1)].add(
            expert_out.reshape(E * cap_pad, D_pad))          # padded slots contribute 0
        y = combined[:, :D][..., None]                       # (N, d_model, 1)
        return y, total_loss

    return jax.jit(forward)


# ----------------------------------------------------------------------------

if __name__ == "__main__":
    cfg = dict(seq_len=16, d_model=32, n_heads=2, num_experts=4, k=2,
               enc_in=4, capacity_factor=1.0, CI=True, noisy_gating=True)
    key = jax.random.PRNGKey(0)
    pkey, xkey = jax.random.split(key)
    params = init_params(pkey, cfg)
    pp = prepare_params(params, cfg)
    fwd = make_cluster_forward(cfg)

    batch = 2
    N = batch * cfg["enc_in"]                               # channel-independent rows
    x = jax.random.normal(xkey, (N, cfg["seq_len"], 1), jnp.float32)

    y, total_loss = fwd(x, pp)
    jax.block_until_ready(y)
    jax.block_until_ready(total_loss)

    assert y.shape == (N, cfg["d_model"], 1)
    assert y.dtype == jnp.float32
    assert np.isfinite(np.asarray(y)).all()
    assert np.isfinite(float(total_loss))
    print("KERNEL_OK")
</pallas_src>

<mosaic_0001>
module attributes {stable_mosaic.version = 11 : i64} {
  func.func @_front_kernel(%arg0: i32, %arg1: memref<8x128xf32, #tpu.memory_space<vmem>>, %arg2: memref<8x1xf32, #tpu.memory_space<vmem>>, %arg3: memref<8x1xf32, #tpu.memory_space<vmem>>, %arg4: memref<128x128xf32, #tpu.memory_space<vmem>>, %arg5: memref<1x128xf32, #tpu.memory_space<vmem>>, %arg6: memref<128x128xf32, #tpu.memory_space<vmem>>, %arg7: memref<1x128xf32, #tpu.memory_space<vmem>>, %arg8: memref<128x128xf32, #tpu.memory_space<vmem>>, %arg9: memref<1x128xf32, #tpu.memory_space<vmem>>, %arg10: memref<8x128xf32, #tpu.memory_space<vmem>>, %arg11: memref<8x128xf32, #tpu.memory_space<vmem>>, %arg12: memref<8x128xf32, #tpu.memory_space<vmem>>) attributes {dimension_semantics = [#tpu.dimension_semantics<parallel>], iteration_bounds = array<i64: 1>, scalar_prefetch = 0 : i64, scratch_operands = 0 : i64, tpu.core_type = #tpu.core_type<tc>, window_params = [{transform_indices = @transform_0, window_bounds = array<i64: 8, 128>}, {transform_indices = @transform_1, window_bounds = array<i64: 8, 1>}, {transform_indices = @transform_2, window_bounds = array<i64: 8, 1>}, {pipeline_mode = #tpu.pipeline_mode<synchronous>, transform_indices = @transform_3, window_bounds = array<i64: 128, 128>}, {pipeline_mode = #tpu.pipeline_mode<synchronous>, transform_indices = @transform_4, window_bounds = array<i64: 1, 128>}, {pipeline_mode = #tpu.pipeline_mode<synchronous>, transform_indices = @transform_5, window_bounds = array<i64: 128, 128>}, {pipeline_mode = #tpu.pipeline_mode<synchronous>, transform_indices = @transform_6, window_bounds = array<i64: 1, 128>}, {pipeline_mode = #tpu.pipeline_mode<synchronous>, transform_indices = @transform_7, window_bounds = array<i64: 128, 128>}, {pipeline_mode = #tpu.pipeline_mode<synchronous>, transform_indices = @transform_8, window_bounds = array<i64: 1, 128>}, {transform_indices = @transform_9, window_bounds = array<i64: 8, 128>}, {transform_indices = @transform_10, window_bounds = array<i64: 8, 128>}, {transform_indices = @transform_11, window_bounds = array<i64: 8, 128>}]} {
    %c0 = arith.constant 0 : index
    %c0_0 = arith.constant 0 : index
    %0 = vector.load %arg1[%c0, %c0_0] : memref<8x128xf32, #tpu.memory_space<vmem>>, vector<8x128xf32>
    %c0_1 = arith.constant 0 : index
    %c0_2 = arith.constant 0 : index
    %1 = vector.load %arg4[%c0_1, %c0_2] : memref<128x128xf32, #tpu.memory_space<vmem>>, vector<128x128xf32>
    %cst = arith.constant dense<0.000000e+00> : vector<8x128xf32>
    %2 = tpu.matmul %0, %1, %cst {dimension_numbers = #tpu.dot_dimension_numbers<[1], [0], [0], [1], [0, 0, 1, 1], [], []>} : vector<8x128xf32>, vector<128x128xf32>, vector<8x128xf32> -> vector<8x128xf32>
    %c0_3 = arith.constant 0 : index
    %c0_4 = arith.constant 0 : index
    %3 = vector.load %arg5[%c0_3, %c0_4] : memref<1x128xf32, #tpu.memory_space<vmem>>, vector<1x128xf32>
    %4 = vector.broadcast %3 : vector<1x128xf32> to vector<8x128xf32>
    %5 = arith.addf %2, %4 : vector<8x128xf32>
    %cst_5 = arith.constant 0.000000e+00 : f32
    %6 = vector.broadcast %cst_5 : f32 to vector<8x128xf32>
    %7 = arith.maximumf %5, %6 : vector<8x128xf32>
    %c0_6 = arith.constant 0 : index
    %c0_7 = arith.constant 0 : index
    %8 = vector.load %arg6[%c0_6, %c0_7] : memref<128x128xf32, #tpu.memory_space<vmem>>, vector<128x128xf32>
    %cst_8 = arith.constant dense<0.000000e+00> : vector<8x128xf32>
    %9 = tpu.matmul %7, %8, %cst_8 {dimension_numbers = #tpu.dot_dimension_numbers<[1], [0], [0], [1], [0, 0, 1, 1], [], []>} : vector<8x128xf32>, vector<128x128xf32>, vector<8x128xf32> -> vector<8x128xf32>
    %c0_9 = arith.constant 0 : index
    %c0_10 = arith.constant 0 : index
    %10 = vector.load %arg7[%c0_9, %c0_10] : memref<1x128xf32, #tpu.memory_space<vmem>>, vector<1x128xf32>
    %11 = vector.broadcast %10 : vector<1x128xf32> to vector<8x128xf32>
    %12 = arith.addf %9, %11 : vector<8x128xf32>
    %c0_11 = arith.constant 0 : index
    %c0_12 = arith.constant 0 : index
    %13 = vector.load %arg10[%c0_11, %c0_12] : memref<8x128xf32, #tpu.memory_space<vmem>>, vector<8x128xf32>
    tpu.vector_store %arg10[%c0_11, %c0_12], %12 {strides = array<i32>} : memref<8x128xf32, #tpu.memory_space<vmem>>, vector<8x128xf32>,
    %14 = tpu.iota {dimensions = array<i32: 1>} : vector<8x128xi32>
    %c16_i32 = arith.constant 16 : i32
    %15 = vector.broadcast %c16_i32 : i32 to vector<8x128xi32>
    %16 = arith.cmpi slt, %14, %15 : vector<8x128xi32>
    %17 = arith.extui %16 : vector<8x128xi1> to vector<8x128xi32>
    %18 = arith.sitofp %17 : vector<8x128xi32> to vector<8x128xf32>
    %cst_13 = arith.constant dense<0.000000e+00> : vector<8xf32>
    %19 = vector.multi_reduction <add>, %0, %cst_13 [1] : vector<8x128xf32> to vector<8xf32>
    %20 = vector.shape_cast %19 : vector<8xf32> to vector<8x1xf32>
    %cst_14 = arith.constant 6.250000e-02 : f32
    %21 = vector.broadcast %cst_14 : f32 to vector<8x1xf32>
    %22 = arith.mulf %20, %21 : vector<8x1xf32>
    %23 = vector.broadcast %22 : vector<8x1xf32> to vector<8x128xf32>
    %24 = arith.subf %0, %23 : vector<8x128xf32>
    %25 = arith.mulf %24, %18 : vector<8x128xf32>
    %26 = arith.mulf %25, %25 : vector<8x128xf32>
    %cst_15 = arith.constant dense<0.000000e+00> : vector<8xf32>
    %27 = vector.multi_reduction <add>, %26, %cst_15 [1] : vector<8x128xf32> to vector<8xf32>
    %28 = vector.shape_cast %27 : vector<8xf32> to vector<8x1xf32>
    %cst_16 = arith.constant 6.250000e-02 : f32
    %29 = vector.broadcast %cst_16 : f32 to vector<8x1xf32>
    %30 = arith.mulf %28, %29 : vector<8x1xf32>
    %cst_17 = arith.constant 9.99999974E-6 : f32
    %31 = vector.broadcast %cst_17 : f32 to vector<8x1xf32>
    %32 = arith.addf %30, %31 : vector<8x1xf32>
    %33 = math.rsqrt %32 : vector<8x1xf32>
    %c0_18 = arith.constant 0 : index
    %c0_19 = arith.constant 0 : index
    %34 = vector.load %arg2[%c0_18, %c0_19] : memref<8x1xf32, #tpu.memory_space<vmem>>, vector<8x1xf32>
    %35 = arith.mulf %33, %34 : vector<8x1xf32>
    %36 = vector.broadcast %35 : vector<8x1xf32> to vector<8x128xf32>
    %37 = arith.mulf %25, %36 : vector<8x128xf32>
    %c0_20 = arith.constant 0 : index
    %c0_21 = arith.constant 0 : index
    %38 = vector.load %arg3[%c0_20, %c0_21] : memref<8x1xf32, #tpu.memory_space<vmem>>, vector<8x1xf32>
    %39 = vector.broadcast %38 : vector<8x1xf32> to vector<8x128xf32>
    %40 = arith.mulf %39, %18 : vector<8x128xf32>
    %41 = arith.addf %37, %40 : vector<8x128xf32>
    %c0_22 = arith.constant 0 : index
    %c0_23 = arith.constant 0 : index
    %42 = vector.load %arg11[%c0_22, %c0_23] : memref<8x128xf32, #tpu.memory_space<vmem>>, vector<8x128xf32>
    tpu.vector_store %arg11[%c0_22, %c0_23], %41 {strides = array<i32>} : memref<8x128xf32, #tpu.memory_space<vmem>>, vector<8x128xf32>,
    %c0_24 = arith.constant 0 : index
    %c0_25 = arith.constant 0 : index
    %43 = vector.load %arg8[%c0_24, %c0_25] : memref<128x128xf32, #tpu.memory_space<vmem>>, vector<128x128xf32>
    %cst_26 = arith.constant dense<0.000000e+00> : vector<8x128xf32>
    %44 = tpu.matmul %41, %43, %cst_26 {dimension_numbers = #tpu.dot_dimension_numbers<[1], [0], [0], [1], [0, 0, 1, 1], [], []>} : vector<8x128xf32>, vector<128x128xf32>, vector<8x128xf32> -> vector<8x128xf32>
    %c0_27 = arith.constant 0 : index
    %c0_28 = arith.constant 0 : index
    %45 = vector.load %arg9[%c0_27, %c0_28] : memref<1x128xf32, #tpu.memory_space<vmem>>, vector<1x128xf32>
    %46 = vector.broadcast %45 : vector<1x128xf32> to vector<8x128xf32>
    %47 = arith.addf %44, %46 : vector<8x128xf32>
    %c0_29 = arith.constant 0 : index
    %c0_30 = arith.constant 0 : index
    %48 = vector.load %arg12[%c0_29, %c0_30] : memref<8x128xf32, #tpu.memory_space<vmem>>, vector<8x128xf32>
    tpu.vector_store %arg12[%c0_29, %c0_30], %47 {strides = array<i32>} : memref<8x128xf32, #tpu.memory_space<vmem>>, vector<8x128xf32>,
    return
  }
  func.func @transform_0(%arg0: i32) -> (i32, i32) {
    %c0_i32 = arith.constant 0 : i32
    %c0_i32_0 = arith.constant 0 : i32
    return %arg0, %c0_i32 : i32, i32
  }
  func.func @transform_1(%arg0: i32) -> (i32, i32) {
    %c0_i32 = arith.constant 0 : i32
    %c0_i32_0 = arith.constant 0 : i32
    return %arg0, %c0_i32 : i32, i32
  }
  func.func @transform_2(%arg0: i32) -> (i32, i32) {
    %c0_i32 = arith.constant 0 : i32
    %c0_i32_0 = arith.constant 0 : i32
    return %arg0, %c0_i32 : i32, i32
  }
  func.func @transform_3(%arg0: i32) -> (i32, i32) {
    %c0_i32 = arith.constant 0 : i32
    %c0_i32_0 = arith.constant 0 : i32
    %c0_i32_1 = arith.constant 0 : i32
    return %c0_i32, %c0_i32_0 : i32, i32
  }
  func.func @transform_4(%arg0: i32) -> (i32, i32) {
    %c0_i32 = arith.constant 0 : i32
    %c0_i32_0 = arith.constant 0 : i32
    %c0_i32_1 = arith.constant 0 : i32
    return %c0_i32, %c0_i32_0 : i32, i32
  }
  func.func @transform_5(%arg0: i32) -> (i32, i32) {
    %c0_i32 = arith.constant 0 : i32
    %c0_i32_0 = arith.constant 0 : i32
    %c0_i32_1 = arith.constant 0 : i32
    return %c0_i32, %c0_i32_0 : i32, i32
  }
  func.func @transform_6(%arg0: i32) -> (i32, i32) {
    %c0_i32 = arith.constant 0 : i32
    %c0_i32_0 = arith.constant 0 : i32
    %c0_i32_1 = arith.constant 0 : i32
    return %c0_i32, %c0_i32_0 : i32, i32
  }
  func.func @transform_7(%arg0: i32) -> (i32, i32) {
    %c0_i32 = arith.constant 0 : i32
    %c0_i32_0 = arith.constant 0 : i32
    %c0_i32_1 = arith.constant 0 : i32
    return %c0_i32, %c0_i32_0 : i32, i32
  }
  func.func @transform_8(%arg0: i32) -> (i32, i32) {
    %c0_i32 = arith.constant 0 : i32
    %c0_i32_0 = arith.constant 0 : i32
    %c0_i32_1 = arith.constant 0 : i32
    return %c0_i32, %c0_i32_0 : i32, i32
  }
  func.func @transform_9(%arg0: i32) -> (i32, i32) {
    %c0_i32 = arith.constant 0 : i32
    %c0_i32_0 = arith.constant 0 : i32
    return %arg0, %c0_i32 : i32, i32
  }
  func.func @transform_10(%arg0: i32) -> (i32, i32) {
    %c0_i32 = arith.constant 0 : i32
    %c0_i32_0 = arith.constant 0 : i32
    return %arg0, %c0_i32 : i32, i32
  }
  func.func @transform_11(%arg0: i32) -> (i32, i32) {
    %c0_i32 = arith.constant 0 : i32
    %c0_i32_0 = arith.constant 0 : i32
    return %arg0, %c0_i32 : i32, i32
  }
}

module attributes {stable_mosaic.version = 11 : i64} {
  func.func @_lin_expert_kernel(%arg0: i32, %arg1: memref<1x8x128xf32, #tpu.memory_space<vmem>>, %arg2: memref<1x128x128xf32, #tpu.memory_space<vmem>>, %arg3: memref<1x1x128xf32, #tpu.memory_space<vmem>>, %arg4: memref<1x8x1xf32, #tpu.memory_space<vmem>>, %arg5: memref<1x8x128xf32, #tpu.memory_space<vmem>>) attributes {dimension_semantics = [#tpu.dimension_semantics<parallel>], iteration_bounds = array<i64: 2>, scalar_prefetch = 0 : i64, scratch_operands = 0 : i64, tpu.core_type = #tpu.core_type<tc>, window_params = [{transform_indices = @transform_0, window_bounds = array<i64: 1, 8, 128>}, {transform_indices = @transform_1, window_bounds = array<i64: 1, 128, 128>}, {transform_indices = @transform_2, window_bounds = array<i64: 1, 1, 128>}, {transform_indices = @transform_3, window_bounds = array<i64: 1, 8, 1>}, {transform_indices = @transform_4, window_bounds = array<i64: 1, 8, 128>}]} {
    %c0 = arith.constant 0 : index
    %c0_0 = arith.constant 0 : index
    %c0_1 = arith.constant 0 : index
    %0 = vector.load %arg1[%c0, %c0_0, %c0_1] : memref<1x8x128xf32, #tpu.memory_space<vmem>>, vector<1x8x128xf32>
    %1 = vector.shape_cast %0 : vector<1x8x128xf32> to vector<8x128xf32>
    %c0_2 = arith.constant 0 : index
    %c0_3 = arith.constant 0 : index
    %c0_4 = arith.constant 0 : index
    %2 = vector.load %arg2[%c0_2, %c0_3, %c0_4] : memref<1x128x128xf32, #tpu.memory_space<vmem>>, vector<1x128x128xf32>
    %3 = vector.shape_cast %2 : vector<1x128x128xf32> to vector<128x128xf32>
    %cst = arith.constant dense<0.000000e+00> : vector<8x128xf32>
    %4 = tpu.matmul %1, %3, %cst {dimension_numbers = #tpu.dot_dimension_numbers<[1], [0], [0], [1], [0, 0, 1, 1], [], []>} : vector<8x128xf32>, vector<128x128xf32>, vector<8x128xf32> -> vector<8x128xf32>
    %c0_5 = arith.constant 0 : index
    %c0_6 = arith.constant 0 : index
    %c0_7 = arith.constant 0 : index
    %5 = vector.load %arg3[%c0_5, %c0_6, %c0_7] : memref<1x1x128xf32, #tpu.memory_space<vmem>>, vector<1x1x128xf32>
    %6 = vector.shape_cast %5 : vector<1x1x128xf32> to vector<1x128xf32>
    %7 = vector.broadcast %6 : vector<1x128xf32> to vector<8x128xf32>
    %8 = arith.addf %4, %7 : vector<8x128xf32>
    %c0_8 = arith.constant 0 : index
    %c0_9 = arith.constant 0 : index
    %c0_10 = arith.constant 0 : index
    %9 = vector.load %arg4[%c0_8, %c0_9, %c0_10] : memref<1x8x1xf32, #tpu.memory_space<vmem>>, vector<1x8x1xf32>
    %10 = vector.shape_cast %9 : vector<1x8x1xf32> to vector<8x1xf32>
    %11 = vector.broadcast %10 : vector<8x1xf32> to vector<8x128xf32>
    %12 = arith.mulf %8, %11 : vector<8x128xf32>
    %c0_11 = arith.constant 0 : index
    %c0_12 = arith.constant 0 : index
    %c0_13 = arith.constant 0 : index
    %13 = vector.load %arg5[%c0_11, %c0_12, %c0_13] : memref<1x8x128xf32, #tpu.memory_space<vmem>>, vector<1x8x128xf32>
    %14 = vector.shape_cast %13 : vector<1x8x128xf32> to vector<8x128xf32>
    %15 = vector.shape_cast %12 : vector<8x128xf32> to vector<1x8x128xf32>
    tpu.vector_store %arg5[%c0_11, %c0_12, %c0_13], %15 {strides = array<i32>} : memref<1x8x128xf32, #tpu.memory_space<vmem>>, vector<1x8x128xf32>,
    return
  }
  func.func @transform_0(%arg0: i32) -> (i32, i32, i32) {
    %c0_i32 = arith.constant 0 : i32
    %c0_i32_0 = arith.constant 0 : i32
    %c0_i32_1 = arith.constant 0 : i32
    return %arg0, %c0_i32, %c0_i32_0 : i32, i32, i32
  }
  func.func @transform_1(%arg0: i32) -> (i32, i32, i32) {
    %c0_i32 = arith.constant 0 : i32
    %c0_i32_0 = arith.constant 0 : i32
    %c0_i32_1 = arith.constant 0 : i32
    return %arg0, %c0_i32, %c0_i32_0 : i32, i32, i32
  }
  func.func @transform_2(%arg0: i32) -> (i32, i32, i32) {
    %c0_i32 = arith.constant 0 : i32
    %c0_i32_0 = arith.constant 0 : i32
    %c0_i32_1 = arith.constant 0 : i32
    return %arg0, %c0_i32, %c0_i32_0 : i32, i32, i32
  }
  func.func @transform_3(%arg0: i32) -> (i32, i32, i32) {
    %c0_i32 = arith.constant 0 : i32
    %c0_i32_0 = arith.constant 0 : i32
    %c0_i32_1 = arith.constant 0 : i32
    return %arg0, %c0_i32, %c0_i32_0 : i32, i32, i32
  }
  func.func @transform_4(%arg0: i32) -> (i32, i32, i32) {
    %c0_i32 = arith.constant 0 : i32
    %c0_i32_0 = arith.constant 0 : i32
    %c0_i32_1 = arith.constant 0 : i32
    return %arg0, %c0_i32, %c0_i32_0 : i32, i32, i32
  }
}

module attributes {stable_mosaic.version = 11 : i64} {
  func.func @_attn_expert_kernel(%arg0: i32, %arg1: memref<1x8x128xf32, #tpu.memory_space<vmem>>, %arg2: memref<1x128x128xf32, #tpu.memory_space<vmem>>, %arg3: memref<1x1x128xf32, #tpu.memory_space<vmem>>, %arg4: memref<1x128x768xf32, #tpu.memory_space<vmem>>, %arg5: memref<1x256x128xf32, #tpu.memory_space<vmem>>, %arg6: memref<1x1x128xf32, #tpu.memory_space<vmem>>, %arg7: memref<1x8x1xf32, #tpu.memory_space<vmem>>, %arg8: memref<1x1x8xf32, #tpu.memory_space<vmem>>, %arg9: memref<1x8x128xf32, #tpu.memory_space<vmem>>) attributes {dimension_semantics = [#tpu.dimension_semantics<parallel>], iteration_bounds = array<i64: 2>, scalar_prefetch = 0 : i64, scratch_operands = 0 : i64, tpu.core_type = #tpu.core_type<tc>, window_params = [{transform_indices = @transform_0, window_bounds = array<i64: 1, 8, 128>}, {transform_indices = @transform_1, window_bounds = array<i64: 1, 128, 128>}, {transform_indices = @transform_2, window_bounds = array<i64: 1, 1, 128>}, {transform_indices = @transform_3, window_bounds = array<i64: 1, 128, 768>}, {transform_indices = @transform_4, window_bounds = array<i64: 1, 256, 128>}, {transform_indices = @transform_5, window_bounds = array<i64: 1, 1, 128>}, {transform_indices = @transform_6, window_bounds = array<i64: 1, 8, 1>}, {transform_indices = @transform_7, window_bounds = array<i64: 1, 1, 8>}, {transform_indices = @transform_8, window_bounds = array<i64: 1, 8, 128>}]} {
    %c0 = arith.constant 0 : index
    %c0_0 = arith.constant 0 : index
    %c0_1 = arith.constant 0 : index
    %0 = vector.load %arg1[%c0, %c0_0, %c0_1] : memref<1x8x128xf32, #tpu.memory_space<vmem>>, vector<1x8x128xf32>
    %1 = vector.shape_cast %0 : vector<1x8x128xf32> to vector<8x128xf32>
    %c0_2 = arith.constant 0 : index
    %c0_3 = arith.constant 0 : index
    %c0_4 = arith.constant 0 : index
    %2 = vector.load %arg2[%c0_2, %c0_3, %c0_4] : memref<1x128x128xf32, #tpu.memory_space<vmem>>, vector<1x128x128xf32>
    %3 = vector.shape_cast %2 : vector<1x128x128xf32> to vector<128x128xf32>
    %cst = arith.constant dense<0.000000e+00> : vector<8x128xf32>
    %4 = tpu.matmul %1, %3, %cst {dimension_numbers = #tpu.dot_dimension_numbers<[1], [0], [0], [1], [0, 0, 1, 1], [], []>} : vector<8x128xf32>, vector<128x128xf32>, vector<8x128xf32> -> vector<8x128xf32>
    %c0_5 = arith.constant 0 : index
    %c0_6 = arith.constant 0 : index
    %c0_7 = arith.constant 0 : index
    %5 = vector.load %arg3[%c0_5, %c0_6, %c0_7] : memref<1x1x128xf32, #tpu.memory_space<vmem>>, vector<1x1x128xf32>
    %6 = vector.shape_cast %5 : vector<1x1x128xf32> to vector<1x128xf32>
    %7 = vector.broadcast %6 : vector<1x128xf32> to vector<8x128xf32>
    %8 = arith.addf %4, %7 : vector<8x128xf32>
    %c0_8 = arith.constant 0 : index
    %c0_9 = arith.constant 0 : index
    %c0_10 = arith.constant 0 : index
    %9 = vector.load %arg4[%c0_8, %c0_9, %c0_10] : memref<1x128x768xf32, #tpu.memory_space<vmem>>, vector<1x128x768xf32>
    %10 = vector.shape_cast %9 : vector<1x128x768xf32> to vector<128x768xf32>
    %cst_11 = arith.constant dense<0.000000e+00> : vector<8x768xf32>
    %11 = tpu.matmul %8, %10, %cst_11 {dimension_numbers = #tpu.dot_dimension_numbers<[1], [0], [0], [1], [0, 0, 1, 1], [], []>} : vector<8x128xf32>, vector<128x768xf32>, vector<8x768xf32> -> vector<8x768xf32>
    %c0_12 = arith.constant 0 : index
    %c0_13 = arith.constant 0 : index
    %c0_14 = arith.constant 0 : index
    %12 = vector.load %arg5[%c0_12, %c0_13, %c0_14] : memref<1x256x128xf32, #tpu.memory_space<vmem>>, vector<1x256x128xf32>
    %13 = vector.shape_cast %12 : vector<1x256x128xf32> to vector<256x128xf32>
    %c0_15 = arith.constant 0 : index
    %c0_16 = arith.constant 0 : index
    %c0_17 = arith.constant 0 : index
    %14 = vector.load %arg8[%c0_15, %c0_16, %c0_17] : memref<1x1x8xf32, #tpu.memory_space<vmem>>, vector<1x1x8xf32>
    %15 = vector.shape_cast %14 : vector<1x1x8xf32> to vector<1x8xf32>
    %cst_18 = arith.constant 1.000000e+00 : f32
    %16 = vector.broadcast %cst_18 : f32 to vector<1x8xf32>
    %17 = arith.subf %15, %16 : vector<1x8xf32>
    %cst_19 = arith.constant 1.000000e+09 : f32
    %18 = vector.broadcast %cst_19 : f32 to vector<1x8xf32>
    %19 = arith.mulf %17, %18 : vector<1x8xf32>
    %c0_20 = arith.constant 0 : index
    %c0_21 = arith.constant 0 : index
    %c0_22 = arith.constant 0 : index
    %20 = vector.load %arg6[%c0_20, %c0_21, %c0_22] : memref<1x1x128xf32, #tpu.memory_space<vmem>>, vector<1x1x128xf32>
    %21 = vector.shape_cast %20 : vector<1x1x128xf32> to vector<1x128xf32>
    %22 = vector.extract_strided_slice %11 {offsets = [0, 0], sizes = [8, 128], strides = [1, 1]} : vector<8x768xf32> to vector<8x128xf32>
    %23 = vector.extract_strided_slice %11 {offsets = [0, 256], sizes = [8, 128], strides = [1, 1]} : vector<8x768xf32> to vector<8x128xf32>
    %24 = vector.extract_strided_slice %11 {offsets = [0, 512], sizes = [8, 128], strides = [1, 1]} : vector<8x768xf32> to vector<8x128xf32>
    %cst_23 = arith.constant dense<0.000000e+00> : vector<8x8xf32>
    %25 = tpu.matmul %22, %23, %cst_23 {dimension_numbers = #tpu.dot_dimension_numbers<[1], [1], [0], [0], [0, 0, 1, 0], [], []>} : vector<8x128xf32>, vector<8x128xf32>, vector<8x8xf32> -> vector<8x8xf32>
    %cst_24 = arith.constant 2.500000e-01 : f32
    %26 = vector.broadcast %cst_24 : f32 to vector<8x8xf32>
    %27 = arith.mulf %25, %26 : vector<8x8xf32>
    %28 = vector.broadcast %19 : vector<1x8xf32> to vector<8x8xf32>
    %29 = arith.addf %27, %28 : vector<8x8xf32>
    %cst_25 = arith.constant dense<0xFF800000> : vector<8xf32>
    %30 = vector.multi_reduction <maximumf>, %29, %cst_25 [1] : vector<8x8xf32> to vector<8xf32>
    %31 = vector.shape_cast %30 : vector<8xf32> to vector<8x1xf32>
    %32 = vector.broadcast %31 : vector<8x1xf32> to vector<8x8xf32>
    %33 = arith.subf %29, %32 : vector<8x8xf32>
    %34 = math.exp %33 : vector<8x8xf32>
    %cst_26 = arith.constant dense<0.000000e+00> : vector<8xf32>
    %35 = vector.multi_reduction <add>, %34, %cst_26 [1] : vector<8x8xf32> to vector<8xf32>
    %36 = vector.shape_cast %35 : vector<8xf32> to vector<8x1xf32>
    %37 = tpu.reciprocal %36 {approx = true} : vector<8x1xf32> -> vector<8x1xf32>
    %38 = vector.broadcast %37 : vector<8x1xf32> to vector<8x8xf32>
    %39 = arith.mulf %34, %38 : vector<8x8xf32>
    %cst_27 = arith.constant dense<0.000000e+00> : vector<8x128xf32>
    %40 = tpu.matmul %39, %24, %cst_27 {dimension_numbers = #tpu.dot_dimension_numbers<[1], [0], [0], [1], [0, 0, 1, 1], [], []>} : vector<8x8xf32>, vector<8x128xf32>, vector<8x128xf32> -> vector<8x128xf32>
    %41 = vector.extract_strided_slice %13 {offsets = [0, 0], sizes = [128, 128], strides = [1, 1]} : vector<256x128xf32> to vector<128x128xf32>
    %cst_28 = arith.constant dense<0.000000e+00> : vector<8x128xf32>
    %42 = tpu.matmul %40, %41, %cst_28 {dimension_numbers = #tpu.dot_dimension_numbers<[1], [0], [0], [1], [0, 0, 1, 1], [], []>} : vector<8x128xf32>, vector<128x128xf32>, vector<8x128xf32> -> vector<8x128xf32>
    %43 = vector.broadcast %21 : vector<1x128xf32> to vector<8x128xf32>
    %44 = arith.addf %43, %42 : vector<8x128xf32>
    %45 = vector.extract_strided_slice %11 {offsets = [0, 128], sizes = [8, 128], strides = [1, 1]} : vector<8x768xf32> to vector<8x128xf32>
    %46 = vector.extract_strided_slice %11 {offsets = [0, 384], sizes = [8, 128], strides = [1, 1]} : vector<8x768xf32> to vector<8x128xf32>
    %47 = vector.extract_strided_slice %11 {offsets = [0, 640], sizes = [8, 128], strides = [1, 1]} : vector<8x768xf32> to vector<8x128xf32>
    %cst_29 = arith.constant dense<0.000000e+00> : vector<8x8xf32>
    %48 = tpu.matmul %45, %46, %cst_29 {dimension_numbers = #tpu.dot_dimension_numbers<[1], [1], [0], [0], [0, 0, 1, 0], [], []>} : vector<8x128xf32>, vector<8x128xf32>, vector<8x8xf32> -> vector<8x8xf32>
    %cst_30 = arith.constant 2.500000e-01 : f32
    %49 = vector.broadcast %cst_30 : f32 to vector<8x8xf32>
    %50 = arith.mulf %48, %49 : vector<8x8xf32>
    %51 = vector.broadcast %19 : vector<1x8xf32> to vector<8x8xf32>
    %52 = arith.addf %50, %51 : vector<8x8xf32>
    %cst_31 = arith.constant dense<0xFF800000> : vector<8xf32>
    %53 = vector.multi_reduction <maximumf>, %52, %cst_31 [1] : vector<8x8xf32> to vector<8xf32>
    %54 = vector.shape_cast %53 : vector<8xf32> to vector<8x1xf32>
    %55 = vector.broadcast %54 : vector<8x1xf32> to vector<8x8xf32>
    %56 = arith.subf %52, %55 : vector<8x8xf32>
    %57 = math.exp %56 : vector<8x8xf32>
    %cst_32 = arith.constant dense<0.000000e+00> : vector<8xf32>
    %58 = vector.multi_reduction <add>, %57, %cst_32 [1] : vector<8x8xf32> to vector<8xf32>
    %59 = vector.shape_cast %58 : vector<8xf32> to vector<8x1xf32>
    %60 = tpu.reciprocal %59 {approx = true} : vector<8x1xf32> -> vector<8x1xf32>
    %61 = vector.broadcast %60 : vector<8x1xf32> to vector<8x8xf32>
    %62 = arith.mulf %57, %61 : vector<8x8xf32>
    %cst_33 = arith.constant dense<0.000000e+00> : vector<8x128xf32>
    %63 = tpu.matmul %62, %47, %cst_33 {dimension_numbers = #tpu.dot_dimension_numbers<[1], [0], [0], [1], [0, 0, 1, 1], [], []>} : vector<8x8xf32>, vector<8x128xf32>, vector<8x128xf32> -> vector<8x128xf32>
    %64 = vector.extract_strided_slice %13 {offsets = [128, 0], sizes = [128, 128], strides = [1, 1]} : vector<256x128xf32> to vector<128x128xf32>
    %cst_34 = arith.constant dense<0.000000e+00> : vector<8x128xf32>
    %65 = tpu.matmul %63, %64, %cst_34 {dimension_numbers = #tpu.dot_dimension_numbers<[1], [0], [0], [1], [0, 0, 1, 1], [], []>} : vector<8x128xf32>, vector<128x128xf32>, vector<8x128xf32> -> vector<8x128xf32>
    %66 = arith.addf %44, %65 : vector<8x128xf32>
    %c0_35 = arith.constant 0 : index
    %c0_36 = arith.constant 0 : index
    %c0_37 = arith.constant 0 : index
    %67 = vector.load %arg7[%c0_35, %c0_36, %c0_37] : memref<1x8x1xf32, #tpu.memory_space<vmem>>, vector<1x8x1xf32>
    %68 = vector.shape_cast %67 : vector<1x8x1xf32> to vector<8x1xf32>
    %69 = vector.broadcast %68 : vector<8x1xf32> to vector<8x128xf32>
    %70 = arith.mulf %66, %69 : vector<8x128xf32>
    %c0_38 = arith.constant 0 : index
    %c0_39 = arith.constant 0 : index
    %c0_40 = arith.constant 0 : index
    %71 = vector.load %arg9[%c0_38, %c0_39, %c0_40] : memref<1x8x128xf32, #tpu.memory_space<vmem>>, vector<1x8x128xf32>
    %72 = vector.shape_cast %71 : vector<1x8x128xf32> to vector<8x128xf32>
    %73 = vector.shape_cast %70 : vector<8x128xf32> to vector<1x8x128xf32>
    tpu.vector_store %arg9[%c0_38, %c0_39, %c0_40], %73 {strides = array<i32>} : memref<1x8x128xf32, #tpu.memory_space<vmem>>, vector<1x8x128xf32>,
    return
  }
  func.func @transform_0(%arg0: i32) -> (i32, i32, i32) {
    %c0_i32 = arith.constant 0 : i32
    %c0_i32_0 = arith.constant 0 : i32
    %c0_i32_1 = arith.constant 0 : i32
    return %arg0, %c0_i32, %c0_i32_0 : i32, i32, i32
  }
  func.func @transform_1(%arg0: i32) -> (i32, i32, i32) {
    %c0_i32 = arith.constant 0 : i32
    %c0_i32_0 = arith.constant 0 : i32
    %c0_i32_1 = arith.constant 0 : i32
    return %arg0, %c0_i32, %c0_i32_0 : i32, i32, i32
  }
  func.func @transform_2(%arg0: i32) -> (i32, i32, i32) {
    %c0_i32 = arith.constant 0 : i32
    %c0_i32_0 = arith.constant 0 : i32
    %c0_i32_1 = arith.constant 0 : i32
    return %arg0, %c0_i32, %c0_i32_0 : i32, i32, i32
  }
  func.func @transform_3(%arg0: i32) -> (i32, i32, i32) {
    %c0_i32 = arith.constant 0 : i32
    %c0_i32_0 = arith.constant 0 : i32
    %c0_i32_1 = arith.constant 0 : i32
    return %arg0, %c0_i32, %c0_i32_0 : i32, i32, i32
  }
  func.func @transform_4(%arg0: i32) -> (i32, i32, i32) {
    %c0_i32 = arith.constant 0 : i32
    %c0_i32_0 = arith.constant 0 : i32
    %c0_i32_1 = arith.constant 0 : i32
    return %arg0, %c0_i32, %c0_i32_0 : i32, i32, i32
  }
  func.func @transform_5(%arg0: i32) -> (i32, i32, i32) {
    %c0_i32 = arith.constant 0 : i32
    %c0_i32_0 = arith.constant 0 : i32
    %c0_i32_1 = arith.constant 0 : i32
    return %arg0, %c0_i32, %c0_i32_0 : i32, i32, i32
  }
  func.func @transform_6(%arg0: i32) -> (i32, i32, i32) {
    %c0_i32 = arith.constant 0 : i32
    %c0_i32_0 = arith.constant 0 : i32
    %c0_i32_1 = arith.constant 0 : i32
    return %arg0, %c0_i32, %c0_i32_0 : i32, i32, i32
  }
  func.func @transform_7(%arg0: i32) -> (i32, i32, i32) {
    %c0_i32 = arith.constant 0 : i32
    %c0_i32_0 = arith.constant 0 : i32
    %c0_i32_1 = arith.constant 0 : i32
    return %arg0, %c0_i32, %c0_i32_0 : i32, i32, i32
  }
  func.func @transform_8(%arg0: i32) -> (i32, i32, i32) {
    %c0_i32 = arith.constant 0 : i32
    %c0_i32_0 = arith.constant 0 : i32
    %c0_i32_1 = arith.constant 0 : i32
    return %arg0, %c0_i32, %c0_i32_0 : i32, i32, i32
  }
}

</mosaic_0001>

<llo_original>
// kernel: eq.3
$region0: #{eq.3}
  %s0 = inlined_call_operand.vmem [shape: s32[8,2], index: 0, kind: input, shape index: {}]
  %s1 = inlined_call_operand.vmem [shape: s32[16], index: 1, kind: output, shape index: {}]
  $region1: #{eq.3} parent=0
    #allocation0 [shape = 'u8[4096]{0}', space=vmem, size = 0x1000, scoped, tag = 'scoped mem for output reshape']
    %v2 = vld [vmem:[%s0] sm:$0x1]
    %vm3 = vcmask 15360
    %4 = vst.msk [vmem:[#allocation0] sm:$0x1] %vm3, %v2
    %s5 = scalar_lea.vmem %s0, 7
    %v6 = vld [vmem:[%s5] sm:$0x1]
    %7 = vrot.lane.b32.xlu0 %v6, 14
    %v8 = vpop.permute.xlu0 %7
    %vm9 = vcmask 130160
    %10 = vst.msk [vmem:[#allocation0] sm:$0x1] %vm9, %v8
    %s11 = scalar_lea.vmem %s0, 6
    %v12 = vld [vmem:[%s11] sm:$0x1]
    %13 = vrot.lane.b32.xlu0 %v12, 12
    %v14 = vpop.permute.xlu0 %13
    %vm15 = vcmask 113760
    %16 = vst.msk [vmem:[#allocation0] sm:$0x1] %vm15, %v14
    %s17 = scalar_lea.vmem %s0, 5
    %v18 = vld [vmem:[%s17] sm:$0x1]
    %19 = vrot.lane.b32.xlu0 %v18, 10
    %v20 = vpop.permute.xlu0 %19
    %vm21 = vcmask 97360
    %22 = vst.msk [vmem:[#allocation0] sm:$0x1] %vm21, %v20
    %s23 = scalar_lea.vmem %s0, 4
    %v24 = vld [vmem:[%s23] sm:$0x1]
    %25 = vrot.lane.b32.xlu0 %v24, 8
    %v26 = vpop.permute.xlu0 %25
    %vm27 = vcmask 80960
    %28 = vst.msk [vmem:[#allocation0] sm:$0x1] %vm27, %v26
    %s29 = scalar_lea.vmem %s0, 3
    %v30 = vld [vmem:[%s29] sm:$0x1]
    %31 = vrot.lane.b32.xlu0 %v30, 6
    %v32 = vpop.permute.xlu0 %31
    %vm33 = vcmask 64560
    %34 = vst.msk [vmem:[#allocation0] sm:$0x1] %vm33, %v32
    %s35 = scalar_lea.vmem %s0, 2
    %v36 = vld [vmem:[%s35] sm:$0x1]
    %37 = vrot.lane.b32.xlu0 %v36, 4
    %v38 = vpop.permute.xlu0 %37
    %vm39 = vcmask 48160
    %40 = vst.msk [vmem:[#allocation0] sm:$0x1] %vm39, %v38
    %s41 = scalar_lea.vmem %s0, 1
    %v42 = vld [vmem:[%s41] sm:$0x1]
    %43 = vrot.lane.b32.xlu0 %v42, 2
    %v44 = vpop.permute.xlu0 %43
    %vm45 = vcmask 31760
    %46 = vst.msk [vmem:[#allocation0] sm:$0x1] %vm45, %v44
    %s48 = ssub.s32 2, 1
    %v49 = vld [vmem:[#allocation0] sm:%s48]
    %s51 = ssub.s32 2, 1
    %52 = vst [vmem:[%s1] sm:%s51] %v49

// kernel: forward.3
$region0: #{forward.3}
  #allocation0 [shape = 'u32[]', space=smem, size = 0x4, offset = 0x4, fixed_abs, tag = 'smem constant byte address 0x4 - core index']
  #allocation1 [shape = 'u32[72,128]{1,0:T(1,128)}', space=vmem, size = 0x9000, scoped, tag = 'internal scratch']
  %s0 = inlined_call_operand.vmem [shape: f32[8,128], index: 0, kind: input, shape index: {}]
  %s1 = inlined_call_operand.vmem [shape: f32[8,1], index: 1, kind: input, shape index: {}]
  %s2 = inlined_call_operand.vmem [shape: f32[8,1], index: 2, kind: input, shape index: {}]
  %s3 = inlined_call_operand.vmem [shape: f32[128,128], index: 3, kind: input, shape index: {}]
  %s4 = inlined_call_operand.vmem [shape: f32[1,128], index: 4, kind: input, shape index: {}]
  %s5 = inlined_call_operand.vmem [shape: f32[128,128], index: 5, kind: input, shape index: {}]
  %s6 = inlined_call_operand.vmem [shape: f32[1,128], index: 6, kind: input, shape index: {}]
  %s7 = inlined_call_operand.vmem [shape: f32[128,128], index: 7, kind: input, shape index: {}]
  %s8 = inlined_call_operand.vmem [shape: f32[1,128], index: 8, kind: input, shape index: {}]
  %s9 = inlined_call_operand.vmem [shape: f32[8,128], index: 9, kind: output, shape index: {0}]
  %s10 = inlined_call_operand.vmem [shape: f32[8,128], index: 10, kind: output, shape index: {1}]
  %s11 = inlined_call_operand.vmem [shape: f32[8,128], index: 11, kind: output, shape index: {2}]
  %12 = xla_tuple %s9, %s10, %s11
  %s13 = sld [smem:[#allocation0]]
  $region62: #{forward.3} parent=0
    _
  %s15 = ssub.s32 1, %s13
  %s16 = scalar_select 0, %s15, %s13
  // Predicated region
  $region2: #{forward.3} parent=0 // pred_check
    _
  $region3: #{forward.3} parent=0 // pred_check_branch
    %18 = sbr.rel (0) target = $region5
  $region4: #{forward.3} parent=0 // pred_region
    _
  $region5: #{forward.3} parent=0 // pred_fallthru
    _
  // Predicated region
  $region6: #{forward.3} parent=0 // pred_check
    _
  $region7: #{forward.3} parent=0 // pred_check_branch
    %20 = sbr.rel (0) target = $region9
  $region8: #{forward.3} parent=0 // pred_region
    _
  $region9: #{forward.3} parent=0 // pred_fallthru
    _
  // Predicated region
  $region10: #{forward.3} parent=0 // pred_check
    _
  $region11: #{forward.3} parent=0 // pred_check_branch
    %22 = sbr.rel (0) target = $region13
  $region12: #{forward.3} parent=0 // pred_region
    _
  $region13: #{forward.3} parent=0 // pred_fallthru
    _
  // Predicated region
  $region14: #{forward.3} parent=0 // pred_check
    _
  $region15: #{forward.3} parent=0 // pred_check_branch
    %24 = sbr.rel (0) target = $region17
  $region16: #{forward.3} parent=0 // pred_region
    _
  $region17: #{forward.3} parent=0 // pred_fallthru
    _
  // Predicated region
  $region18: #{forward.3} parent=0 // pred_check
    _
  $region19: #{forward.3} parent=0 // pred_check_branch
    %26 = sbr.rel (0) target = $region21
  $region20: #{forward.3} parent=0 // pred_region
    _
  $region21: #{forward.3} parent=0 // pred_fallthru
    _
  // Predicated region
  $region22: #{forward.3} parent=0 // pred_check
    _
  $region23: #{forward.3} parent=0 // pred_check_branch
    %28 = sbr.rel (0) target = $region25
  $region24: #{forward.3} parent=0 // pred_region
    _
  $region25: #{forward.3} parent=0 // pred_fallthru
    _
  // Predicated region
  $region26: #{forward.3} parent=0 // pred_check
    _
  $region27: #{forward.3} parent=0 // pred_check_branch
    %30 = sbr.rel (0) target = $region29
  $region28: #{forward.3} parent=0 // pred_region
    _
  $region29: #{forward.3} parent=0 // pred_fallthru
    _
  // Predicated region
  $region30: #{forward.3} parent=0 // pred_check
    _
  $region31: #{forward.3} parent=0 // pred_check_branch
    %32 = sbr.rel (0) target = $region33
  $region32: #{forward.3} parent=0 // pred_region
    _
  $region33: #{forward.3} parent=0 // pred_fallthru
    _
  // Predicated region
  $region34: #{forward.3} parent=0 // pred_check
    _
  $region35: #{forward.3} parent=0 // pred_check_branch
    %34 = sbr.rel (0) target = $region37
  $region36: #{forward.3} parent=0 // pred_region
    _
  $region37: #{forward.3} parent=0 // pred_fallthru
    _
  %v35 = vld [vmem:[%s0] sm:$0xff]
  %v36 = vld [vmem:[%s3] sm:$0xff]
  %v37 = vld [vmem:[%s3 + $0x8] sm:$0xff]
  %v38 = vld [vmem:[%s3 + $0x10] sm:$0xff]
  %v39 = vld [vmem:[%s3 + $0x18] sm:$0xff]
  %v40 = vld [vmem:[%s3 + $0x20] sm:$0xff]
  %v41 = vld [vmem:[%s3 + $0x28] sm:$0xff]
  %v42 = vld [vmem:[%s3 + $0x30] sm:$0xff]
  %v43 = vld [vmem:[%s3 + $0x38] sm:$0xff]
  %v44 = vld [vmem:[%s3 + $0x40] sm:$0xff]
  %v45 = vld [vmem:[%s3 + $0x48] sm:$0xff]
  %v46 = vld [vmem:[%s3 + $0x50] sm:$0xff]
  %v47 = vld [vmem:[%s3 + $0x58] sm:$0xff]
  %v48 = vld [vmem:[%s3 + $0x60] sm:$0xff]
  %v49 = vld [vmem:[%s3 + $0x68] sm:$0xff]
  %v50 = vld [vmem:[%s3 + $0x70] sm:$0xff]
  %v51 = vld [vmem:[%s3 + $0x78] sm:$0xff]
  %v52 = vld [vmem:[%s4] sm:$0x1]
  %v54 = vperm.slane %v52, 0
  %56 = vmatpush.msra.mxu0 %v51
  %57 = vmatpush.msra.mxu0 %v50
  %58 = vmatpush.msra.mxu0 %v49
  %59 = vmatpush.msra.mxu0 %v48
  %60 = vmatpush.msra.mxu0 %v47
  %61 = vmatpush.msra.mxu0 %v46
  %62 = vmatpush.msra.mxu0 %v45
  %63 = vmatpush.msra.mxu0 %v44
  %64 = vmatpush.msra.mxu0 %v43
  %65 = vmatpush.msra.mxu0 %v42
  %66 = vmatpush.msra.mxu0 %v41
  %67 = vmatpush.msra.mxu0 %v40
  %68 = vmatpush.msra.mxu0 %v39
  %69 = vmatpush.msra.mxu0 %v38
  %70 = vmatpush.msra.mxu0 %v37
  %71 = vmatpush.msra.mxu0 %v36
  %72 = vmatmul.f32.gmra.mxu0 %v35
  %v73 = vpop.f32.mrf.mxu0
  %v74 = vadd.f32 %v54, %v73
  %75 = vdwg.mxu0
  %v76 = vmax.f32 %v74, 0.0
  %v77 = vld [vmem:[%s5] sm:$0xff]
  %v78 = vld [vmem:[%s5 + $0x8] sm:$0xff]
  %v79 = vld [vmem:[%s5 + $0x10] sm:$0xff]
  %v80 = vld [vmem:[%s5 + $0x18] sm:$0xff]
  %v81 = vld [vmem:[%s5 + $0x20] sm:$0xff]
  %v82 = vld [vmem:[%s5 + $0x28] sm:$0xff]
  %v83 = vld [vmem:[%s5 + $0x30] sm:$0xff]
  %v84 = vld [vmem:[%s5 + $0x38] sm:$0xff]
  %v85 = vld [vmem:[%s5 + $0x40] sm:$0xff]
  %v86 = vld [vmem:[%s5 + $0x48] sm:$0xff]
  %v87 = vld [vmem:[%s5 + $0x50] sm:$0xff]
  %v88 = vld [vmem:[%s5 + $0x58] sm:$0xff]
  %v89 = vld [vmem:[%s5 + $0x60] sm:$0xff]
  %v90 = vld [vmem:[%s5 + $0x68] sm:$0xff]
  %v91 = vld [vmem:[%s5 + $0x70] sm:$0xff]
  %v92 = vld [vmem:[%s5 + $0x78] sm:$0xff]
  %v93 = vld [vmem:[%s6] sm:$0x1]
  %v95 = vperm.slane %v93, 0
  %97 = vmatpush.msra.mxu0 %v92
  %98 = vmatpush.msra.mxu0 %v91
  %99 = vmatpush.msra.mxu0 %v90
  %100 = vmatpush.msra.mxu0 %v89
  %101 = vmatpush.msra.mxu0 %v88
  %102 = vmatpush.msra.mxu0 %v87
  %103 = vmatpush.msra.mxu0 %v86
  %104 = vmatpush.msra.mxu0 %v85
  %105 = vmatpush.msra.mxu0 %v84
  %106 = vmatpush.msra.mxu0 %v83
  %107 = vmatpush.msra.mxu0 %v82
  %108 = vmatpush.msra.mxu0 %v81
  %109 = vmatpush.msra.mxu0 %v80
  %110 = vmatpush.msra.mxu0 %v79
  %111 = vmatpush.msra.mxu0 %v78
  %112 = vmatpush.msra.mxu0 %v77
  %113 = vmatmul.f32.gmra.mxu0 %v76
  %v114 = vpop.f32.mrf.mxu0
  %v115 = vadd.f32 %v95, %v114
  %116 = vdwg.mxu0
  %117 = vst [vmem:[%s9] sm:$0xff] %v115
  %v118 = vlaneseq
  %v119 = vand.u32 %v118, 127
  %vm120 = vcmp.lt.s32.totalorder %v119, 16
  %v121 = vsel %vm120, 1, 0
  %v122 = vcvt.s32.f32 %v121
  %123 = vadd.xlane.f32.xlu0 %v35
  %v124 = vpop.xlane.xlu0 %123
  %v125 = vmul.f32 %v124, 0.0625
  %v126 = vsub.f32 %v35, %v125
  %v127 = vmul.f32 %v126, %v122
  %v128 = vmul.f32 %v127, %v127
  %129 = vadd.xlane.f32.xlu0 %v128
  %v130 = vpop.xlane.xlu0 %129
  %v131 = vmul.f32 %v130, 0.0625
  %v132 = vadd.f32 %v131, 1e-05
  %v133 = vrsqrt.pop %v132
  %v134 = vmul.f32 %v133, %v132
  %v135 = vmul.f32 %v134, %v133
  %v136 = vmul.f32 0.5, %v135
  %v137 = vsub.f32 1.5, %v136
  %v138 = vmul.f32 %v133, %v137
  %vm139 = vweird.f32 %v132
  %vm140 = vweird.f32 %v133
  %vm141 = vmor %vm139, %vm140
  %v142 = vsel %vm141, %v133, %v138
  %v143 = vld [vmem:[%s1] sm:$0xff]
  %v144 = vmul.f32 %v142, %v143
  %146 = vset.pattern.permute.xlu0 0
  %147 = vperm.xlu0 %146, %v144
  %v148 = vpop.permute.xlu0 %147
  %v150 = vmul.f32 %v127, %v148
  %v151 = vld [vmem:[%s2] sm:$0xff]
  %153 = vset.pattern.permute.xlu0 0
  %154 = vperm.xlu0 %153, %v151
  %v155 = vpop.permute.xlu0 %154
  %v157 = vmul.f32 %v155, %v122
  %v158 = vadd.f32 %v150, %v157
  %159 = vst [vmem:[%s10] sm:$0xff] %v158
  %v160 = vld [vmem:[%s7] sm:$0xff]
  %v161 = vld [vmem:[%s7 + $0x8] sm:$0xff]
  %v162 = vld [vmem:[%s7 + $0x10] sm:$0xff]
  %v163 = vld [vmem:[%s7 + $0x18] sm:$0xff]
  %v164 = vld [vmem:[%s7 + $0x20] sm:$0xff]
  %v165 = vld [vmem:[%s7 + $0x28] sm:$0xff]
  %v166 = vld [vmem:[%s7 + $0x30] sm:$0xff]
  %v167 = vld [vmem:[%s7 + $0x38] sm:$0xff]
  %v168 = vld [vmem:[%s7 + $0x40] sm:$0xff]
  %v169 = vld [vmem:[%s7 + $0x48] sm:$0xff]
  %v170 = vld [vmem:[%s7 + $0x50] sm:$0xff]
  %v171 = vld [vmem:[%s7 + $0x58] sm:$0xff]
  %v172 = vld [vmem:[%s7 + $0x60] sm:$0xff]
  %v173 = vld [vmem:[%s7 + $0x68] sm:$0xff]
  %v174 = vld [vmem:[%s7 + $0x70] sm:$0xff]
  %v175 = vld [vmem:[%s7 + $0x78] sm:$0xff]
  %v176 = vld [vmem:[%s8] sm:$0x1]
  %v178 = vperm.slane %v176, 0
  %180 = vmatpush.msra.mxu0 %v175
  %181 = vmatpush.msra.mxu0 %v174
  %182 = vmatpush.msra.mxu0 %v173
  %183 = vmatpush.msra.mxu0 %v172
  %184 = vmatpush.msra.mxu0 %v171
  %185 = vmatpush.msra.mxu0 %v170
  %186 = vmatpush.msra.mxu0 %v169
  %187 = vmatpush.msra.mxu0 %v168
  %188 = vmatpush.msra.mxu0 %v167
  %189 = vmatpush.msra.mxu0 %v166
  %190 = vmatpush.msra.mxu0 %v165
  %191 = vmatpush.msra.mxu0 %v164
  %192 = vmatpush.msra.mxu0 %v163
  %193 = vmatpush.msra.mxu0 %v162
  %194 = vmatpush.msra.mxu0 %v161
  %195 = vmatpush.msra.mxu0 %v160
  %196 = vmatmul.f32.gmra.mxu0 %v158
  %v197 = vpop.f32.mrf.mxu0
  %v198 = vadd.f32 %v178, %v197
  %199 = vdwg.mxu0
  %200 = vst [vmem:[%s11] sm:$0xff] %v198
  // Predicated region
  $region38: #{forward.3} parent=0 // pred_check
    _
  $region39: #{forward.3} parent=0 // pred_check_branch
    %202 = sbr.rel (0) target = $region41
  $region40: #{forward.3} parent=0 // pred_region
    _
  $region41: #{forward.3} parent=0 // pred_fallthru
    _
  // Predicated region
  $region42: #{forward.3} parent=0 // pred_check
    _
  $region43: #{forward.3} parent=0 // pred_check_branch
    %204 = sbr.rel (0) target = $region45
  $region44: #{forward.3} parent=0 // pred_region
    _
  $region45: #{forward.3} parent=0 // pred_fallthru
    _
  // Predicated region
  $region46: #{forward.3} parent=0 // pred_check
    _
  $region47: #{forward.3} parent=0 // pred_check_branch
    %206 = sbr.rel (0) target = $region49
  $region48: #{forward.3} parent=0 // pred_region
    _
  $region49: #{forward.3} parent=0 // pred_fallthru
    _
  // Predicated region
  $region50: #{forward.3} parent=0 // pred_check
    _
  $region51: #{forward.3} parent=0 // pred_check_branch
    %208 = sbr.rel (0) target = $region53
  $region52: #{forward.3} parent=0 // pred_region
    _
  $region53: #{forward.3} parent=0 // pred_fallthru
    _
  // Predicated region
  $region54: #{forward.3} parent=0 // pred_check
    _
  $region55: #{forward.3} parent=0 // pred_check_branch
    %210 = sbr.rel (0) target = $region57
  $region56: #{forward.3} parent=0 // pred_region
    _
  $region57: #{forward.3} parent=0 // pred_fallthru
    _
  // Predicated region
  $region58: #{forward.3} parent=0 // pred_check
    _
  $region59: #{forward.3} parent=0 // pred_check_branch
    %212 = sbr.rel (0) target = $region61
  $region60: #{forward.3} parent=0 // pred_region
    _
  $region61: #{forward.3} parent=0 // pred_fallthru
    _

// kernel: forward.4
$region0: #{forward.4}
  #allocation0 [shape = 'u32[]', space=smem, size = 0x4, offset = 0x4, fixed_abs, tag = 'smem constant byte address 0x4 - core index']
  #allocation1 [shape = 'u32[72,128]{1,0:T(1,128)}', space=vmem, size = 0x9000, scoped, tag = 'internal scratch']
  %s0 = inlined_call_operand.vmem [shape: f32[2,8,128], index: 0, kind: input, shape index: {}]
  %s1 = inlined_call_operand.vmem [shape: f32[2,128,128], index: 1, kind: input, shape index: {}]
  %s2 = inlined_call_operand.vmem [shape: f32[2,1,128], index: 2, kind: input, shape index: {}]
  %s3 = inlined_call_operand.vmem [shape: f32[2,8,1], index: 3, kind: input, shape index: {}]
  %s4 = inlined_call_operand.vmem [shape: f32[2,8,128], index: 4, kind: output, shape index: {}]
  %s5 = sld [smem:[#allocation0]]
  $region49: #{forward.4} parent=0
    _
  %s7 = ssub.s32 1, %s5
  %s8 = scalar_select 0, %s7, %s5
  loop: start=0, step=1, limit=4
  $region2: #{forward.4} parent=0 // loop_pre_header
    _
  $region3: #{forward.4} parent=0 // loop_header
    %s10 = sphi 0, %s14
    %p11 = scmp.ge.s32.totalorder %s10, 4
    %s20 = sphi 0, %s22
    %s23 = sphi 0, %s20
    %s24 = sphi 0, %s23
    %s40 = sphi 0, %s24
    %s46 = sphi 0, %s48
    %s49 = sphi 0, %s46
    %s50 = sphi 0, %s49
    %s66 = sphi 0, %s50
    %s72 = sphi 0, %s74
    %s75 = sphi 0, %s72
    %s76 = sphi 0, %s75
    %s92 = sphi 0, %s76
    %s98 = sphi 0, %s100
    %s101 = sphi 0, %s98
    %s102 = sphi 0, %s101
    %s118 = sphi 0, %s102
    %s124 = sphi 0, %s126
    %s127 = sphi 0, %s124
    %s128 = sphi 0, %s127
    %s144 = sphi 0, %s128
  $region4: #{forward.4} parent=0 // loop_header_branch
    %13 = sbr.rel (%p11) target = $region8
  $region5: #{forward.4} parent=0 // loop_body
    %s15 = ssub.s32 %s10, 1
    %s16 = ssub.s32 %s10, 2
    %s17 = sadd.s32 %s10, 1
    %s18 = ssub.s32 %s10, %s17
    %p19 = scmp.eq.s32.totalorder %s18, 0
    %s21 = sadd.s32 %s20, 1
    %s22 = scalar_select %p19, %s20, %s21
    %p25 = pneg %p19
    %p26 = scmp.eq.s32.totalorder %s10, 1
    %p27 = por %p25, %p26
    %p28 = scmp.ne.s32.totalorder %s20, %s23
    %p29 = scmp.eq.s32.totalorder %s10, 0
    %p30 = por %p28, %p29
    %p31 = scmp.ne.s32.totalorder %s20, %s23
    %p32 = scmp.eq.s32.totalorder %s15, 1
    %p33 = por %p31, %p32
    %p34 = scmp.ne.s32.totalorder %s23, %s24
    %p35 = scmp.eq.s32.totalorder %s15, 0
    %p36 = por %p34, %p35
    %p37 = scmp.ne.s32.totalorder %s23, %s24
    %p38 = scmp.eq.s32.totalorder %s16, 1
    %p39 = por %p37, %p38
    %p41 = scmp.ne.s32.totalorder %s24, %s40
    %p42 = scmp.eq.s32.totalorder %s16, 0
    %p43 = por %p41, %p42
    %s44 = ssub.s32 %s10, %s17
    %p45 = scmp.eq.s32.totalorder %s44, 0
    %s47 = sadd.s32 %s46, 1
    %s48 = scalar_select %p45, %s46, %s47
    %p51 = pneg %p45
    %p52 = scmp.eq.s32.totalorder %s10, 1
    %p53 = por %p51, %p52
    %p54 = scmp.ne.s32.totalorder %s46, %s49
    %p55 = scmp.eq.s32.totalorder %s10, 0
    %p56 = por %p54, %p55
    %p57 = scmp.ne.s32.totalorder %s46, %s49
    %p58 = scmp.eq.s32.totalorder %s15, 1
    %p59 = por %p57, %p58
    %p60 = scmp.ne.s32.totalorder %s49, %s50
    %p61 = scmp.eq.s32.totalorder %s15, 0
    %p62 = por %p60, %p61
    %p63 = scmp.ne.s32.totalorder %s49, %s50
    %p64 = scmp.eq.s32.totalorder %s16, 1
    %p65 = por %p63, %p64
    %p67 = scmp.ne.s32.totalorder %s50, %s66
    %p68 = scmp.eq.s32.totalorder %s16, 0
    %p69 = por %p67, %p68
    %s70 = ssub.s32 %s10, %s17
    %p71 = scmp.eq.s32.totalorder %s70, 0
    %s73 = sadd.s32 %s72, 1
    %s74 = scalar_select %p71, %s72, %s73
    %p77 = pneg %p71
    %p78 = scmp.eq.s32.totalorder %s10, 1
    %p79 = por %p77, %p78
    %p80 = scmp.ne.s32.totalorder %s72, %s75
    %p81 = scmp.eq.s32.totalorder %s10, 0
    %p82 = por %p80, %p81
    %p83 = scmp.ne.s32.totalorder %s72, %s75
    %p84 = scmp.eq.s32.totalorder %s15, 1
    %p85 = por %p83, %p84
    %p86 = scmp.ne.s32.totalorder %s75, %s76
    %p87 = scmp.eq.s32.totalorder %s15, 0
    %p88 = por %p86, %p87
    %p89 = scmp.ne.s32.totalorder %s75, %s76
    %p90 = scmp.eq.s32.totalorder %s16, 1
    %p91 = por %p89, %p90
    %p93 = scmp.ne.s32.totalorder %s76, %s92
    %p94 = scmp.eq.s32.totalorder %s16, 0
    %p95 = por %p93, %p94
    %s96 = ssub.s32 %s10, %s17
    %p97 = scmp.eq.s32.totalorder %s96, 0
    %s99 = sadd.s32 %s98, 1
    %s100 = scalar_select %p97, %s98, %s99
    %p103 = pneg %p97
    %p104 = scmp.eq.s32.totalorder %s10, 1
    %p105 = por %p103, %p104
    %p106 = scmp.ne.s32.totalorder %s98, %s101
    %p107 = scmp.eq.s32.totalorder %s10, 0
    %p108 = por %p106, %p107
    %p109 = scmp.ne.s32.totalorder %s98, %s101
    %p110 = scmp.eq.s32.totalorder %s15, 1
    %p111 = por %p109, %p110
    %p112 = scmp.ne.s32.totalorder %s101, %s102
    %p113 = scmp.eq.s32.totalorder %s15, 0
    %p114 = por %p112, %p113
    %p115 = scmp.ne.s32.totalorder %s101, %s102
    %p116 = scmp.eq.s32.totalorder %s16, 1
    %p117 = por %p115, %p116
    %p119 = scmp.ne.s32.totalorder %s102, %s118
    %p120 = scmp.eq.s32.totalorder %s16, 0
    %p121 = por %p119, %p120
    %s122 = ssub.s32 %s10, %s17
    %p123 = scmp.eq.s32.totalorder %s122, 0
    %s125 = sadd.s32 %s124, 1
    %s126 = scalar_select %p123, %s124, %s125
    %p129 = pneg %p123
    %p130 = scmp.eq.s32.totalorder %s10, 1
    %p131 = por %p129, %p130
    %p132 = scmp.ne.s32.totalorder %s124, %s127
    %p133 = scmp.eq.s32.totalorder %s10, 0
    %p134 = por %p132, %p133
    %p135 = scmp.ne.s32.totalorder %s124, %s127
    %p136 = scmp.eq.s32.totalorder %s15, 1
    %p137 = por %p135, %p136
    %p138 = scmp.ne.s32.totalorder %s127, %s128
    %p139 = scmp.eq.s32.totalorder %s15, 0
    %p140 = por %p138, %p139
    %p141 = scmp.ne.s32.totalorder %s127, %s128
    %p142 = scmp.eq.s32.totalorder %s16, 1
    %p143 = por %p141, %p142
    %p145 = scmp.ne.s32.totalorder %s128, %s144
    %p146 = scmp.eq.s32.totalorder %s16, 0
    %p147 = por %p145, %p146
    %p148 = scmp.le.s32.totalorder 1, %s10
    %p149 = scmp.lt.s32.totalorder %s10, 3
    %p150 = pnand %p148, %p149
    %p151 = pneg %p150
    // Predicated region
    $region9: #{forward.4} parent=5 // pred_check
      _
    $region10: #{forward.4} parent=5 // pred_check_branch
      %153 = sbr.rel (%p150) target = $region12
    $region11: #{forward.4} parent=5 // pred_region
      %s154 = ssub.s32 %s10, 1
    $region12: #{forward.4} parent=5 // pred_fallthru
      _
    %p155 = scmp.lt.s32.totalorder %s10, 2
    // Predicated region
    $region13: #{forward.4} parent=5 // pred_check
      %p156 = pneg %p155
    $region14: #{forward.4} parent=5 // pred_check_branch
      %158 = sbr.rel (%p156) target = $region16
    $region15: #{forward.4} parent=5 // pred_region
      // Predicated region
      $region17: #{forward.4} parent=15 // pred_check
        %p159 = pneg %p30
      $region18: #{forward.4} parent=15 // pred_check_branch
        %161 = sbr.rel (%p159) target = $region20
      $region19: #{forward.4} parent=15 // pred_region
        %p162 = scmp.lt.s32.totalorder %s10, 1
        %s163 = scalar_select %p162, %s10, 1
        %s164 = smul.addr %s163, 8
        %s165 = scalar_lea.vmem %s0, %s164
      $region20: #{forward.4} parent=15 // pred_fallthru
        _
      // Predicated region
      $region21: #{forward.4} parent=15 // pred_check
        %p166 = pneg %p56
      $region22: #{forward.4} parent=15 // pred_check_branch
        %168 = sbr.rel (%p166) target = $region24
      $region23: #{forward.4} parent=15 // pred_region
        %p169 = scmp.lt.s32.totalorder %s10, 1
        %s170 = scalar_select %p169, %s10, 1
        %s171 = smul.addr %s170, 16
        %s172 = smul.addr %s171, 8
        %s173 = scalar_lea.vmem %s1, %s172
      $region24: #{forward.4} parent=15 // pred_fallthru
        _
      // Predicated region
      $region25: #{forward.4} parent=15 // pred_check
        %p174 = pneg %p82
      $region26: #{forward.4} parent=15 // pred_check_branch
        %176 = sbr.rel (%p174) target = $region28
      $region27: #{forward.4} parent=15 // pred_region
        %p177 = scmp.lt.s32.totalorder %s10, 1
        %s178 = scalar_select %p177, %s10, 1
        %s179 = scalar_lea.vmem %s2, %s178
      $region28: #{forward.4} parent=15 // pred_fallthru
        _
      // Predicated region
      $region29: #{forward.4} parent=15 // pred_check
        %p180 = pneg %p108
      $region30: #{forward.4} parent=15 // pred_check_branch
        %182 = sbr.rel (%p180) target = $region32
      $region31: #{forward.4} parent=15 // pred_region
        %p183 = scmp.lt.s32.totalorder %s10, 1
        %s184 = scalar_select %p183, %s10, 1
        %s185 = smul.addr %s184, 8
        %s186 = scalar_lea.vmem %s3, %s185
      $region32: #{forward.4} parent=15 // pred_fallthru
        _
    $region16: #{forward.4} parent=5 // pred_fallthru
      _
    %p187 = scmp.le.s32.totalorder 1, %s10
    %p188 = scmp.lt.s32.totalorder %s10, 3
    %p189 = pnand %p187, %p188
    %p190 = pneg %p189
    // Predicated region
    $region33: #{forward.4} parent=5 // pred_check
      _
    $region34: #{forward.4} parent=5 // pred_check_branch
      %192 = sbr.rel (%p189) target = $region36
    $region35: #{forward.4} parent=5 // pred_region
      %s193 = ssub.s32 %s10, 1
      %p194 = scmp.lt.s32.totalorder %s15, 1
      %s195 = scalar_select %p194, %s15, 1
      %s196 = smul.addr %s195, 8
      %s197 = scalar_lea.vmem %s0, %s196
      %p198 = pneg %p36
      %p199 = pneg %p33
      %p200 = scmp.lt.s32.totalorder %s15, 1
      %s201 = scalar_select %p200, %s15, 1
      %s202 = smul.addr %s201, 16
      %s203 = smul.addr %s202, 8
      %s204 = scalar_lea.vmem %s1, %s203
      %p205 = pneg %p62
      %p206 = pneg %p59
      %p207 = scmp.lt.s32.totalorder %s15, 1
      %s208 = scalar_select %p207, %s15, 1
      %s209 = scalar_lea.vmem %s2, %s208
      %p210 = pneg %p88
      %p211 = pneg %p85
      %p212 = scmp.lt.s32.totalorder %s15, 1
      %s213 = scalar_select %p212, %s15, 1
      %s214 = smul.addr %s213, 8
      %s215 = scalar_lea.vmem %s3, %s214
      %p216 = pneg %p114
      %p217 = pneg %p111
      %p218 = pneg %p140
      %p219 = pneg %p137
      %p220 = scmp.lt.s32.totalorder %s15, 1
      %s221 = scalar_select %p220, %s15, 1
      %s222 = smul.addr %s221, 8
      %s223 = scalar_lea.vmem %s4, %s222
      %p224 = scmp.lt.s32.totalorder %s15, 1
      %s225 = scalar_select %p224, %s15, 1
      %s226 = smul.addr %s225, 8
      %s227 = scalar_lea.vmem %s0, %s226
      %p228 = scmp.lt.s32.totalorder %s15, 1
      %s229 = scalar_select %p228, %s15, 1
      %s230 = smul.addr %s229, 16
      %s231 = smul.addr %s230, 8
      %s232 = scalar_lea.vmem %s1, %s231
      %p233 = scmp.lt.s32.totalorder %s15, 1
      %s234 = scalar_select %p233, %s15, 1
      %s235 = scalar_lea.vmem %s2, %s234
      %p236 = scmp.lt.s32.totalorder %s15, 1
      %s237 = scalar_select %p236, %s15, 1
      %s238 = smul.addr %s237, 8
      %s239 = scalar_lea.vmem %s3, %s238
      %p240 = scmp.lt.s32.totalorder %s15, 1
      %s241 = scalar_select %p240, %s15, 1
      %s242 = smul.addr %s241, 8
      %s243 = scalar_lea.vmem %s4, %s242
      %v244 = vld [vmem:[%s227] sm:$0xff]
      %v245 = vld [vmem:[%s232] sm:$0xff]
      %v246 = vld [vmem:[%s232 + $0x8] sm:$0xff]
      %v247 = vld [vmem:[%s232 + $0x10] sm:$0xff]
      %v248 = vld [vmem:[%s232 + $0x18] sm:$0xff]
      %v249 = vld [vmem:[%s232 + $0x20] sm:$0xff]
      %v250 = vld [vmem:[%s232 + $0x28] sm:$0xff]
      %v251 = vld [vmem:[%s232 + $0x30] sm:$0xff]
      %v252 = vld [vmem:[%s232 + $0x38] sm:$0xff]
      %v253 = vld [vmem:[%s232 + $0x40] sm:$0xff]
      %v254 = vld [vmem:[%s232 + $0x48] sm:$0xff]
      %v255 = vld [vmem:[%s232 + $0x50] sm:$0xff]
      %v256 = vld [vmem:[%s232 + $0x58] sm:$0xff]
      %v257 = vld [vmem:[%s232 + $0x60] sm:$0xff]
      %v258 = vld [vmem:[%s232 + $0x68] sm:$0xff]
      %v259 = vld [vmem:[%s232 + $0x70] sm:$0xff]
      %v260 = vld [vmem:[%s232 + $0x78] sm:$0xff]
      %v261 = vld [vmem:[%s235] sm:$0x1]
      %v263 = vperm.slane %v261, 0
      %265 = vmatpush.msra.mxu0 %v260
      %266 = vmatpush.msra.mxu0 %v259
      %267 = vmatpush.msra.mxu0 %v258
      %268 = vmatpush.msra.mxu0 %v257
      %269 = vmatpush.msra.mxu0 %v256
      %270 = vmatpush.msra.mxu0 %v255
      %271 = vmatpush.msra.mxu0 %v254
      %272 = vmatpush.msra.mxu0 %v253
      %273 = vmatpush.msra.mxu0 %v252
      %274 = vmatpush.msra.mxu0 %v251
      %275 = vmatpush.msra.mxu0 %v250
      %276 = vmatpush.msra.mxu0 %v249
      %277 = vmatpush.msra.mxu0 %v248
      %278 = vmatpush.msra.mxu0 %v247
      %279 = vmatpush.msra.mxu0 %v246
      %280 = vmatpush.msra.mxu0 %v245
      %281 = vmatmul.f32.gmra.mxu0 %v244
      %v282 = vpop.f32.mrf.mxu0
      %v283 = vadd.f32 %v263, %v282
      %284 = vdwg.mxu0
      %v285 = vld [vmem:[%s239] sm:$0xff]
      %287 = vset.pattern.permute.xlu0 0
      %288 = vperm.xlu0 %287, %v285
      %v289 = vpop.permute.xlu0 %288
      %v291 = vmul.f32 %v283, %v289
      %292 = vst [vmem:[%s243] sm:$0xff] %v291
      %p293 = scmp.lt.s32.totalorder %s15, 1
      %s294 = scalar_select %p293, %s15, 1
      %s295 = smul.addr %s294, 8
      %s296 = scalar_lea.vmem %s4, %s295
      // Predicated region
      $region37: #{forward.4} parent=35 // pred_check
        %p297 = pneg %p137
      $region38: #{forward.4} parent=35 // pred_check_branch
        %299 = sbr.rel (%p297) target = $region40
      $region39: #{forward.4} parent=35 // pred_region
        _
      $region40: #{forward.4} parent=35 // pred_fallthru
        _
    $region36: #{forward.4} parent=5 // pred_fallthru
      _
    %p300 = scmp.le.s32.totalorder 2, %s10
    // Predicated region
    $region41: #{forward.4} parent=5 // pred_check
      %p301 = pneg %p300
    $region42: #{forward.4} parent=5 // pred_check_branch
      %303 = sbr.rel (%p301) target = $region44
    $region43: #{forward.4} parent=5 // pred_region
      %s304 = ssub.s32 %s10, 2
      // Predicated region
      $region45: #{forward.4} parent=43 // pred_check
        %p305 = pneg %p143
      $region46: #{forward.4} parent=43 // pred_check_branch
        %307 = sbr.rel (%p305) target = $region48
      $region47: #{forward.4} parent=43 // pred_region
        %p308 = scmp.lt.s32.totalorder %s16, 1
        %s309 = scalar_select %p308, %s16, 1
        %s310 = smul.addr %s309, 8
        %s311 = scalar_lea.vmem %s4, %s310
      $region48: #{forward.4} parent=43 // pred_fallthru
        _
    $region44: #{forward.4} parent=5 // pred_fallthru
      _
  $region6: #{forward.4} parent=0 // loop_footer
    %s14 = sadd.s32 1, %s10
  $region7: #{forward.4} parent=0 // loop_footer_branch
    %9 = sbr.rel target = $region3
  $region8: #{forward.4} parent=0 // loop_exit
    _

// kernel: forward.5
$region0: #{forward.5}
  #allocation0 [shape = 'u32[]', space=smem, size = 0x4, offset = 0x4, fixed_abs, tag = 'smem constant byte address 0x4 - core index']
  #allocation1 [shape = 'u32[72,128]{1,0:T(1,128)}', space=vmem, size = 0x9000, scoped, tag = 'internal scratch']
  %s0 = inlined_call_operand.vmem [shape: f32[2,8,128], index: 0, kind: input, shape index: {}]
  %s1 = inlined_call_operand.vmem [shape: f32[2,128,128], index: 1, kind: input, shape index: {}]
  %s2 = inlined_call_operand.vmem [shape: f32[2,1,128], index: 2, kind: input, shape index: {}]
  %s3 = inlined_call_operand.vmem [shape: f32[2,128,768], index: 3, kind: input, shape index: {}]
  %s4 = inlined_call_operand.vmem [shape: f32[2,256,128], index: 4, kind: input, shape index: {}]
  %s5 = inlined_call_operand.vmem [shape: f32[2,1,128], index: 5, kind: input, shape index: {}]
  %s6 = inlined_call_operand.vmem [shape: f32[2,8,1], index: 6, kind: input, shape index: {}]
  %s7 = inlined_call_operand.vmem [shape: f32[2,1,8], index: 7, kind: input, shape index: {}]
  %s8 = inlined_call_operand.vmem [shape: f32[2,8,128], index: 8, kind: output, shape index: {}]
  %s9 = sld [smem:[#allocation0]]
  $region65: #{forward.5} parent=0
    _
  %s11 = ssub.s32 1, %s9
  %s12 = scalar_select 0, %s11, %s9
  loop: start=0, step=1, limit=4
  $region2: #{forward.5} parent=0 // loop_pre_header
    _
  $region3: #{forward.5} parent=0 // loop_header
    %s14 = sphi 0, %s18
    %p15 = scmp.ge.s32.totalorder %s14, 4
    %s24 = sphi 0, %s26
    %s27 = sphi 0, %s24
    %s28 = sphi 0, %s27
    %s44 = sphi 0, %s28
    %s50 = sphi 0, %s52
    %s53 = sphi 0, %s50
    %s54 = sphi 0, %s53
    %s70 = sphi 0, %s54
    %s76 = sphi 0, %s78
    %s79 = sphi 0, %s76
    %s80 = sphi 0, %s79
    %s96 = sphi 0, %s80
    %s102 = sphi 0, %s104
    %s105 = sphi 0, %s102
    %s106 = sphi 0, %s105
    %s122 = sphi 0, %s106
    %s128 = sphi 0, %s130
    %s131 = sphi 0, %s128
    %s132 = sphi 0, %s131
    %s148 = sphi 0, %s132
    %s154 = sphi 0, %s156
    %s157 = sphi 0, %s154
    %s158 = sphi 0, %s157
    %s174 = sphi 0, %s158
    %s180 = sphi 0, %s182
    %s183 = sphi 0, %s180
    %s184 = sphi 0, %s183
    %s200 = sphi 0, %s184
    %s206 = sphi 0, %s208
    %s209 = sphi 0, %s206
    %s210 = sphi 0, %s209
    %s226 = sphi 0, %s210
    %s232 = sphi 0, %s234
    %s235 = sphi 0, %s232
    %s236 = sphi 0, %s235
    %s252 = sphi 0, %s236
  $region4: #{forward.5} parent=0 // loop_header_branch
    %17 = sbr.rel (%p15) target = $region8
  $region5: #{forward.5} parent=0 // loop_body
    %s19 = ssub.s32 %s14, 1
    %s20 = ssub.s32 %s14, 2
    %s21 = sadd.s32 %s14, 1
    %s22 = ssub.s32 %s14, %s21
    %p23 = scmp.eq.s32.totalorder %s22, 0
    %s25 = sadd.s32 %s24, 1
    %s26 = scalar_select %p23, %s24, %s25
    %p29 = pneg %p23
    %p30 = scmp.eq.s32.totalorder %s14, 1
    %p31 = por %p29, %p30
    %p32 = scmp.ne.s32.totalorder %s24, %s27
    %p33 = scmp.eq.s32.totalorder %s14, 0
    %p34 = por %p32, %p33
    %p35 = scmp.ne.s32.totalorder %s24, %s27
    %p36 = scmp.eq.s32.totalorder %s19, 1
    %p37 = por %p35, %p36
    %p38 = scmp.ne.s32.totalorder %s27, %s28
    %p39 = scmp.eq.s32.totalorder %s19, 0
    %p40 = por %p38, %p39
    %p41 = scmp.ne.s32.totalorder %s27, %s28
    %p42 = scmp.eq.s32.totalorder %s20, 1
    %p43 = por %p41, %p42
    %p45 = scmp.ne.s32.totalorder %s28, %s44
    %p46 = scmp.eq.s32.totalorder %s20, 0
    %p47 = por %p45, %p46
    %s48 = ssub.s32 %s14, %s21
    %p49 = scmp.eq.s32.totalorder %s48, 0
    %s51 = sadd.s32 %s50, 1
    %s52 = scalar_select %p49, %s50, %s51
    %p55 = pneg %p49
    %p56 = scmp.eq.s32.totalorder %s14, 1
    %p57 = por %p55, %p56
    %p58 = scmp.ne.s32.totalorder %s50, %s53
    %p59 = scmp.eq.s32.totalorder %s14, 0
    %p60 = por %p58, %p59
    %p61 = scmp.ne.s32.totalorder %s50, %s53
    %p62 = scmp.eq.s32.totalorder %s19, 1
    %p63 = por %p61, %p62
    %p64 = scmp.ne.s32.totalorder %s53, %s54
    %p65 = scmp.eq.s32.totalorder %s19, 0
    %p66 = por %p64, %p65
    %p67 = scmp.ne.s32.totalorder %s53, %s54
    %p68 = scmp.eq.s32.totalorder %s20, 1
    %p69 = por %p67, %p68
    %p71 = scmp.ne.s32.totalorder %s54, %s70
    %p72 = scmp.eq.s32.totalorder %s20, 0
    %p73 = por %p71, %p72
    %s74 = ssub.s32 %s14, %s21
    %p75 = scmp.eq.s32.totalorder %s74, 0
    %s77 = sadd.s32 %s76, 1
    %s78 = scalar_select %p75, %s76, %s77
    %p81 = pneg %p75
    %p82 = scmp.eq.s32.totalorder %s14, 1
    %p83 = por %p81, %p82
    %p84 = scmp.ne.s32.totalorder %s76, %s79
    %p85 = scmp.eq.s32.totalorder %s14, 0
    %p86 = por %p84, %p85
    %p87 = scmp.ne.s32.totalorder %s76, %s79
    %p88 = scmp.eq.s32.totalorder %s19, 1
    %p89 = por %p87, %p88
    %p90 = scmp.ne.s32.totalorder %s79, %s80
    %p91 = scmp.eq.s32.totalorder %s19, 0
    %p92 = por %p90, %p91
    %p93 = scmp.ne.s32.totalorder %s79, %s80
    %p94 = scmp.eq.s32.totalorder %s20, 1
    %p95 = por %p93, %p94
    %p97 = scmp.ne.s32.totalorder %s80, %s96
    %p98 = scmp.eq.s32.totalorder %s20, 0
    %p99 = por %p97, %p98
    %s100 = ssub.s32 %s14, %s21
    %p101 = scmp.eq.s32.totalorder %s100, 0
    %s103 = sadd.s32 %s102, 1
    %s104 = scalar_select %p101, %s102, %s103
    %p107 = pneg %p101
    %p108 = scmp.eq.s32.totalorder %s14, 1
    %p109 = por %p107, %p108
    %p110 = scmp.ne.s32.totalorder %s102, %s105
    %p111 = scmp.eq.s32.totalorder %s14, 0
    %p112 = por %p110, %p111
    %p113 = scmp.ne.s32.totalorder %s102, %s105
    %p114 = scmp.eq.s32.totalorder %s19, 1
    %p115 = por %p113, %p114
    %p116 = scmp.ne.s32.totalorder %s105, %s106
    %p117 = scmp.eq.s32.totalorder %s19, 0
    %p118 = por %p116, %p117
    %p119 = scmp.ne.s32.totalorder %s105, %s106
    %p120 = scmp.eq.s32.totalorder %s20, 1
    %p121 = por %p119, %p120
    %p123 = scmp.ne.s32.totalorder %s106, %s122
    %p124 = scmp.eq.s32.totalorder %s20, 0
    %p125 = por %p123, %p124
    %s126 = ssub.s32 %s14, %s21
    %p127 = scmp.eq.s32.totalorder %s126, 0
    %s129 = sadd.s32 %s128, 1
    %s130 = scalar_select %p127, %s128, %s129
    %p133 = pneg %p127
    %p134 = scmp.eq.s32.totalorder %s14, 1
    %p135 = por %p133, %p134
    %p136 = scmp.ne.s32.totalorder %s128, %s131
    %p137 = scmp.eq.s32.totalorder %s14, 0
    %p138 = por %p136, %p137
    %p139 = scmp.ne.s32.totalorder %s128, %s131
    %p140 = scmp.eq.s32.totalorder %s19, 1
    %p141 = por %p139, %p140
    %p142 = scmp.ne.s32.totalorder %s131, %s132
    %p143 = scmp.eq.s32.totalorder %s19, 0
    %p144 = por %p142, %p143
    %p145 = scmp.ne.s32.totalorder %s131, %s132
    %p146 = scmp.eq.s32.totalorder %s20, 1
    %p147 = por %p145, %p146
    %p149 = scmp.ne.s32.totalorder %s132, %s148
    %p150 = scmp.eq.s32.totalorder %s20, 0
    %p151 = por %p149, %p150
    %s152 = ssub.s32 %s14, %s21
    %p153 = scmp.eq.s32.totalorder %s152, 0
    %s155 = sadd.s32 %s154, 1
    %s156 = scalar_select %p153, %s154, %s155
    %p159 = pneg %p153
    %p160 = scmp.eq.s32.totalorder %s14, 1
    %p161 = por %p159, %p160
    %p162 = scmp.ne.s32.totalorder %s154, %s157
    %p163 = scmp.eq.s32.totalorder %s14, 0
    %p164 = por %p162, %p163
    %p165 = scmp.ne.s32.totalorder %s154, %s157
    %p166 = scmp.eq.s32.totalorder %s19, 1
    %p167 = por %p165, %p166
    %p168 = scmp.ne.s32.totalorder %s157, %s158
    %p169 = scmp.eq.s32.totalorder %s19, 0
    %p170 = por %p168, %p169
    %p171 = scmp.ne.s32.totalorder %s157, %s158
    %p172 = scmp.eq.s32.totalorder %s20, 1
    %p173 = por %p171, %p172
    %p175 = scmp.ne.s32.totalorder %s158, %s174
    %p176 = scmp.eq.s32.totalorder %s20, 0
    %p177 = por %p175, %p176
    %s178 = ssub.s32 %s14, %s21
    %p179 = scmp.eq.s32.totalorder %s178, 0
    %s181 = sadd.s32 %s180, 1
    %s182 = scalar_select %p179, %s180, %s181
    %p185 = pneg %p179
    %p186 = scmp.eq.s32.totalorder %s14, 1
    %p187 = por %p185, %p186
    %p188 = scmp.ne.s32.totalorder %s180, %s183
    %p189 = scmp.eq.s32.totalorder %s14, 0
    %p190 = por %p188, %p189
    %p191 = scmp.ne.s32.totalorder %s180, %s183
    %p192 = scmp.eq.s32.totalorder %s19, 1
    %p193 = por %p191, %p192
    %p194 = scmp.ne.s32.totalorder %s183, %s184
    %p195 = scmp.eq.s32.totalorder %s19, 0
    %p196 = por %p194, %p195
    %p197 = scmp.ne.s32.totalorder %s183, %s184
    %p198 = scmp.eq.s32.totalorder %s20, 1
    %p199 = por %p197, %p198
    %p201 = scmp.ne.s32.totalorder %s184, %s200
    %p202 = scmp.eq.s32.totalorder %s20, 0
    %p203 = por %p201, %p202
    %s204 = ssub.s32 %s14, %s21
    %p205 = scmp.eq.s32.totalorder %s204, 0
    %s207 = sadd.s32 %s206, 1
    %s208 = scalar_select %p205, %s206, %s207
    %p211 = pneg %p205
    %p212 = scmp.eq.s32.totalorder %s14, 1
    %p213 = por %p211, %p212
    %p214 = scmp.ne.s32.totalorder %s206, %s209
    %p215 = scmp.eq.s32.totalorder %s14, 0
    %p216 = por %p214, %p215
    %p217 = scmp.ne.s32.totalorder %s206, %s209
    %p218 = scmp.eq.s32.totalorder %s19, 1
    %p219 = por %p217, %p218
    %p220 = scmp.ne.s32.totalorder %s209, %s210
    %p221 = scmp.eq.s32.totalorder %s19, 0
    %p222 = por %p220, %p221
    %p223 = scmp.ne.s32.totalorder %s209, %s210
    %p224 = scmp.eq.s32.totalorder %s20, 1
    %p225 = por %p223, %p224
    %p227 = scmp.ne.s32.totalorder %s210, %s226
    %p228 = scmp.eq.s32.totalorder %s20, 0
    %p229 = por %p227, %p228
    %s230 = ssub.s32 %s14, %s21
    %p231 = scmp.eq.s32.totalorder %s230, 0
    %s233 = sadd.s32 %s232, 1
    %s234 = scalar_select %p231, %s232, %s233
    %p237 = pneg %p231
    %p238 = scmp.eq.s32.totalorder %s14, 1
    %p239 = por %p237, %p238
    %p240 = scmp.ne.s32.totalorder %s232, %s235
    %p241 = scmp.eq.s32.totalorder %s14, 0
    %p242 = por %p240, %p241
    %p243 = scmp.ne.s32.totalorder %s232, %s235
    %p244 = scmp.eq.s32.totalorder %s19, 1
    %p245 = por %p243, %p244
    %p246 = scmp.ne.s32.totalorder %s235, %s236
    %p247 = scmp.eq.s32.totalorder %s19, 0
    %p248 = por %p246, %p247
    %p249 = scmp.ne.s32.totalorder %s235, %s236
    %p250 = scmp.eq.s32.totalorder %s20, 1
    %p251 = por %p249, %p250
    %p253 = scmp.ne.s32.totalorder %s236, %s252
    %p254 = scmp.eq.s32.totalorder %s20, 0
    %p255 = por %p253, %p254
    %p256 = scmp.le.s32.totalorder 1, %s14
    %p257 = scmp.lt.s32.totalorder %s14, 3
    %p258 = pnand %p256, %p257
    %p259 = pneg %p258
    // Predicated region
    $region9: #{forward.5} parent=5 // pred_check
      _
    $region10: #{forward.5} parent=5 // pred_check_branch
      %261 = sbr.rel (%p258) target = $region12
    $region11: #{forward.5} parent=5 // pred_region
      %s262 = ssub.s32 %s14, 1
    $region12: #{forward.5} parent=5 // pred_fallthru
      _
    %p263 = scmp.lt.s32.totalorder %s14, 2
    // Predicated region
    $region13: #{forward.5} parent=5 // pred_check
      %p264 = pneg %p263
    $region14: #{forward.5} parent=5 // pred_check_branch
      %266 = sbr.rel (%p264) target = $region16
    $region15: #{forward.5} parent=5 // pred_region
      // Predicated region
      $region17: #{forward.5} parent=15 // pred_check
        %p267 = pneg %p34
      $region18: #{forward.5} parent=15 // pred_check_branch
        %269 = sbr.rel (%p267) target = $region20
      $region19: #{forward.5} parent=15 // pred_region
        %p270 = scmp.lt.s32.totalorder %s14, 1
        %s271 = scalar_select %p270, %s14, 1
        %s272 = smul.addr %s271, 8
        %s273 = scalar_lea.vmem %s0, %s272
      $region20: #{forward.5} parent=15 // pred_fallthru
        _
      // Predicated region
      $region21: #{forward.5} parent=15 // pred_check
        %p274 = pneg %p60
      $region22: #{forward.5} parent=15 // pred_check_branch
        %276 = sbr.rel (%p274) target = $region24
      $region23: #{forward.5} parent=15 // pred_region
        %p277 = scmp.lt.s32.totalorder %s14, 1
        %s278 = scalar_select %p277, %s14, 1
        %s279 = smul.addr %s278, 16
        %s280 = smul.addr %s279, 8
        %s281 = scalar_lea.vmem %s1, %s280
      $region24: #{forward.5} parent=15 // pred_fallthru
        _
      // Predicated region
      $region25: #{forward.5} parent=15 // pred_check
        %p282 = pneg %p86
      $region26: #{forward.5} parent=15 // pred_check_branch
        %284 = sbr.rel (%p282) target = $region28
      $region27: #{forward.5} parent=15 // pred_region
        %p285 = scmp.lt.s32.totalorder %s14, 1
        %s286 = scalar_select %p285, %s14, 1
        %s287 = scalar_lea.vmem %s2, %s286
      $region28: #{forward.5} parent=15 // pred_fallthru
        _
      // Predicated region
      $region29: #{forward.5} parent=15 // pred_check
        %p288 = pneg %p112
      $region30: #{forward.5} parent=15 // pred_check_branch
        %290 = sbr.rel (%p288) target = $region32
      $region31: #{forward.5} parent=15 // pred_region
        %p291 = scmp.lt.s32.totalorder %s14, 1
        %s292 = scalar_select %p291, %s14, 1
        %s293 = smul.addr %s292, 96
        %s294 = smul.addr %s293, 8
        %s295 = scalar_lea.vmem %s3, %s294
      $region32: #{forward.5} parent=15 // pred_fallthru
        _
      // Predicated region
      $region33: #{forward.5} parent=15 // pred_check
        %p296 = pneg %p138
      $region34: #{forward.5} parent=15 // pred_check_branch
        %298 = sbr.rel (%p296) target = $region36
      $region35: #{forward.5} parent=15 // pred_region
        %p299 = scmp.lt.s32.totalorder %s14, 1
        %s300 = scalar_select %p299, %s14, 1
        %s301 = smul.addr %s300, 32
        %s302 = smul.addr %s301, 8
        %s303 = scalar_lea.vmem %s4, %s302
      $region36: #{forward.5} parent=15 // pred_fallthru
        _
      // Predicated region
      $region37: #{forward.5} parent=15 // pred_check
        %p304 = pneg %p164
      $region38: #{forward.5} parent=15 // pred_check_branch
        %306 = sbr.rel (%p304) target = $region40
      $region39: #{forward.5} parent=15 // pred_region
        %p307 = scmp.lt.s32.totalorder %s14, 1
        %s308 = scalar_select %p307, %s14, 1
        %s309 = scalar_lea.vmem %s5, %s308
      $region40: #{forward.5} parent=15 // pred_fallthru
        _
      // Predicated region
      $region41: #{forward.5} parent=15 // pred_check
        %p310 = pneg %p190
      $region42: #{forward.5} parent=15 // pred_check_branch
        %312 = sbr.rel (%p310) target = $region44
      $region43: #{forward.5} parent=15 // pred_region
        %p313 = scmp.lt.s32.totalorder %s14, 1
        %s314 = scalar_select %p313, %s14, 1
        %s315 = smul.addr %s314, 8
        %s316 = scalar_lea.vmem %s6, %s315
      $region44: #{forward.5} parent=15 // pred_fallthru
        _
      // Predicated region
      $region45: #{forward.5} parent=15 // pred_check
        %p317 = pneg %p216
      $region46: #{forward.5} parent=15 // pred_check_branch
        %319 = sbr.rel (%p317) target = $region48
      $region47: #{forward.5} parent=15 // pred_region
        %p320 = scmp.lt.s32.totalorder %s14, 1
        %s321 = scalar_select %p320, %s14, 1
        %s322 = scalar_lea.vmem %s7, %s321
      $region48: #{forward.5} parent=15 // pred_fallthru
        _
    $region16: #{forward.5} parent=5 // pred_fallthru
      _
    %p323 = scmp.le.s32.totalorder 1, %s14
    %p324 = scmp.lt.s32.totalorder %s14, 3
    %p325 = pnand %p323, %p324
    %p326 = pneg %p325
    // Predicated region
    $region49: #{forward.5} parent=5 // pred_check
      _
    $region50: #{forward.5} parent=5 // pred_check_branch
      %328 = sbr.rel (%p325) target = $region52
    $region51: #{forward.5} parent=5 // pred_region
      %s329 = ssub.s32 %s14, 1
      %p330 = scmp.lt.s32.totalorder %s19, 1
      %s331 = scalar_select %p330, %s19, 1
      %s332 = smul.addr %s331, 8
      %s333 = scalar_lea.vmem %s0, %s332
      %p334 = pneg %p40
      %p335 = pneg %p37
      %p336 = scmp.lt.s32.totalorder %s19, 1
      %s337 = scalar_select %p336, %s19, 1
      %s338 = smul.addr %s337, 16
      %s339 = smul.addr %s338, 8
      %s340 = scalar_lea.vmem %s1, %s339
      %p341 = pneg %p66
      %p342 = pneg %p63
      %p343 = scmp.lt.s32.totalorder %s19, 1
      %s344 = scalar_select %p343, %s19, 1
      %s345 = scalar_lea.vmem %s2, %s344
      %p346 = pneg %p92
      %p347 = pneg %p89
      %p348 = scmp.lt.s32.totalorder %s19, 1
      %s349 = scalar_select %p348, %s19, 1
      %s350 = smul.addr %s349, 96
      %s351 = smul.addr %s350, 8
      %s352 = scalar_lea.vmem %s3, %s351
      %p353 = pneg %p118
      %p354 = pneg %p115
      %p355 = scmp.lt.s32.totalorder %s19, 1
      %s356 = scalar_select %p355, %s19, 1
      %s357 = smul.addr %s356, 32
      %s358 = smul.addr %s357, 8
      %s359 = scalar_lea.vmem %s4, %s358
      %p360 = pneg %p144
      %p361 = pneg %p141
      %p362 = scmp.lt.s32.totalorder %s19, 1
      %s363 = scalar_select %p362, %s19, 1
      %s364 = scalar_lea.vmem %s5, %s363
      %p365 = pneg %p170
      %p366 = pneg %p167
      %p367 = scmp.lt.s32.totalorder %s19, 1
      %s368 = scalar_select %p367, %s19, 1
      %s369 = smul.addr %s368, 8
      %s370 = scalar_lea.vmem %s6, %s369
      %p371 = pneg %p196
      %p372 = pneg %p193
      %p373 = scmp.lt.s32.totalorder %s19, 1
      %s374 = scalar_select %p373, %s19, 1
      %s375 = scalar_lea.vmem %s7, %s374
      %p376 = pneg %p222
      %p377 = pneg %p219
      %p378 = pneg %p248
      %p379 = pneg %p245
      %p380 = scmp.lt.s32.totalorder %s19, 1
      %s381 = scalar_select %p380, %s19, 1
      %s382 = smul.addr %s381, 8
      %s383 = scalar_lea.vmem %s8, %s382
      %p384 = scmp.lt.s32.totalorder %s19, 1
      %s385 = scalar_select %p384, %s19, 1
      %s386 = smul.addr %s385, 8
      %s387 = scalar_lea.vmem %s0, %s386
      %p388 = scmp.lt.s32.totalorder %s19, 1
      %s389 = scalar_select %p388, %s19, 1
      %s390 = smul.addr %s389, 16
      %s391 = smul.addr %s390, 8
      %s392 = scalar_lea.vmem %s1, %s391
      %p393 = scmp.lt.s32.totalorder %s19, 1
      %s394 = scalar_select %p393, %s19, 1
      %s395 = scalar_lea.vmem %s2, %s394
      %p396 = scmp.lt.s32.totalorder %s19, 1
      %s397 = scalar_select %p396, %s19, 1
      %s398 = smul.addr %s397, 96
      %s399 = smul.addr %s398, 8
      %s400 = scalar_lea.vmem %s3, %s399
      %p401 = scmp.lt.s32.totalorder %s19, 1
      %s402 = scalar_select %p401, %s19, 1
      %s403 = smul.addr %s402, 32
      %s404 = smul.addr %s403, 8
      %s405 = scalar_lea.vmem %s4, %s404
      %p406 = scmp.lt.s32.totalorder %s19, 1
      %s407 = scalar_select %p406, %s19, 1
      %s408 = scalar_lea.vmem %s5, %s407
      %p409 = scmp.lt.s32.totalorder %s19, 1
      %s410 = scalar_select %p409, %s19, 1
      %s411 = smul.addr %s410, 8
      %s412 = scalar_lea.vmem %s6, %s411
      %p413 = scmp.lt.s32.totalorder %s19, 1
      %s414 = scalar_select %p413, %s19, 1
      %s415 = scalar_lea.vmem %s7, %s414
      %p416 = scmp.lt.s32.totalorder %s19, 1
      %s417 = scalar_select %p416, %s19, 1
      %s418 = smul.addr %s417, 8
      %s419 = scalar_lea.vmem %s8, %s418
      %v420 = vld [vmem:[%s387] sm:$0xff]
      %v421 = vld [vmem:[%s392] sm:$0xff]
      %v422 = vld [vmem:[%s392 + $0x8] sm:$0xff]
      %v423 = vld [vmem:[%s392 + $0x10] sm:$0xff]
      %v424 = vld [vmem:[%s392 + $0x18] sm:$0xff]
      %v425 = vld [vmem:[%s392 + $0x20] sm:$0xff]
      %v426 = vld [vmem:[%s392 + $0x28] sm:$0xff]
      %v427 = vld [vmem:[%s392 + $0x30] sm:$0xff]
      %v428 = vld [vmem:[%s392 + $0x38] sm:$0xff]
      %v429 = vld [vmem:[%s392 + $0x40] sm:$0xff]
      %v430 = vld [vmem:[%s392 + $0x48] sm:$0xff]
      %v431 = vld [vmem:[%s392 + $0x50] sm:$0xff]
      %v432 = vld [vmem:[%s392 + $0x58] sm:$0xff]
      %v433 = vld [vmem:[%s392 + $0x60] sm:$0xff]
      %v434 = vld [vmem:[%s392 + $0x68] sm:$0xff]
      %v435 = vld [vmem:[%s392 + $0x70] sm:$0xff]
      %v436 = vld [vmem:[%s392 + $0x78] sm:$0xff]
      %v437 = vld [vmem:[%s395] sm:$0x1]
      %v439 = vperm.slane %v437, 0
      %441 = vmatpush.msra.mxu0 %v436
      %442 = vmatpush.msra.mxu0 %v435
      %443 = vmatpush.msra.mxu0 %v434
      %444 = vmatpush.msra.mxu0 %v433
      %445 = vmatpush.msra.mxu0 %v432
      %446 = vmatpush.msra.mxu0 %v431
      %447 = vmatpush.msra.mxu0 %v430
      %448 = vmatpush.msra.mxu0 %v429
      %449 = vmatpush.msra.mxu0 %v428
      %450 = vmatpush.msra.mxu0 %v427
      %451 = vmatpush.msra.mxu0 %v426
      %452 = vmatpush.msra.mxu0 %v425
      %453 = vmatpush.msra.mxu0 %v424
      %454 = vmatpush.msra.mxu0 %v423
      %455 = vmatpush.msra.mxu0 %v422
      %456 = vmatpush.msra.mxu0 %v421
      %457 = vmatmul.f32.gmra.mxu0 %v420
      %v458 = vpop.f32.mrf.mxu0
      %v459 = vadd.f32 %v439, %v458
      %460 = vdwg.mxu0
      %v461 = vld [vmem:[%s400] sm:$0xff]
      %v462 = vld [vmem:[%s400 + $0x8] sm:$0xff]
      %v463 = vld [vmem:[%s400 + $0x10] sm:$0xff]
      %v464 = vld [vmem:[%s400 + $0x18] sm:$0xff]
      %v465 = vld [vmem:[%s400 + $0x20] sm:$0xff]
      %v466 = vld [vmem:[%s400 + $0x28] sm:$0xff]
      %v467 = vld [vmem:[%s400 + $0x30] sm:$0xff]
      %v468 = vld [vmem:[%s400 + $0x38] sm:$0xff]
      %v469 = vld [vmem:[%s400 + $0x40] sm:$0xff]
      %v470 = vld [vmem:[%s400 + $0x48] sm:$0xff]
      %v471 = vld [vmem:[%s400 + $0x50] sm:$0xff]
      %v472 = vld [vmem:[%s400 + $0x58] sm:$0xff]
      %v473 = vld [vmem:[%s400 + $0x60] sm:$0xff]
      %v474 = vld [vmem:[%s400 + $0x68] sm:$0xff]
      %v475 = vld [vmem:[%s400 + $0x70] sm:$0xff]
      %v476 = vld [vmem:[%s400 + $0x78] sm:$0xff]
      %v477 = vld [vmem:[%s400 + $0x80] sm:$0xff]
      %v478 = vld [vmem:[%s400 + $0x88] sm:$0xff]
      %v479 = vld [vmem:[%s400 + $0x90] sm:$0xff]
      %v480 = vld [vmem:[%s400 + $0x98] sm:$0xff]
      %v481 = vld [vmem:[%s400 + $0xa0] sm:$0xff]
      %v482 = vld [vmem:[%s400 + $0xa8] sm:$0xff]
      %v483 = vld [vmem:[%s400 + $0xb0] sm:$0xff]
      %v484 = vld [vmem:[%s400 + $0xb8] sm:$0xff]
      %v485 = vld [vmem:[%s400 + $0xc0] sm:$0xff]
      %v486 = vld [vmem:[%s400 + $0xc8] sm:$0xff]
      %v487 = vld [vmem:[%s400 + $0xd0] sm:$0xff]
      %v488 = vld [vmem:[%s400 + $0xd8] sm:$0xff]
      %v489 = vld [vmem:[%s400 + $0xe0] sm:$0xff]
      %v490 = vld [vmem:[%s400 + $0xe8] sm:$0xff]
      %v491 = vld [vmem:[%s400 + $0xf0] sm:$0xff]
      %v492 = vld [vmem:[%s400 + $0xf8] sm:$0xff]
      %v493 = vld [vmem:[%s400 + $0x100] sm:$0xff]
      %v494 = vld [vmem:[%s400 + $0x108] sm:$0xff]
      %v495 = vld [vmem:[%s400 + $0x110] sm:$0xff]
      %v496 = vld [vmem:[%s400 + $0x118] sm:$0xff]
      %v497 = vld [vmem:[%s400 + $0x120] sm:$0xff]
      %v498 = vld [vmem:[%s400 + $0x128] sm:$0xff]
      %v499 = vld [vmem:[%s400 + $0x130] sm:$0xff]
      %v500 = vld [vmem:[%s400 + $0x138] sm:$0xff]
      %v501 = vld [vmem:[%s400 + $0x140] sm:$0xff]
      %v502 = vld [vmem:[%s400 + $0x148] sm:$0xff]
      %v503 = vld [vmem:[%s400 + $0x150] sm:$0xff]
      %v504 = vld [vmem:[%s400 + $0x158] sm:$0xff]
      %v505 = vld [vmem:[%s400 + $0x160] sm:$0xff]
      %v506 = vld [vmem:[%s400 + $0x168] sm:$0xff]
      %v507 = vld [vmem:[%s400 + $0x170] sm:$0xff]
      %v508 = vld [vmem:[%s400 + $0x178] sm:$0xff]
      %v509 = vld [vmem:[%s400 + $0x180] sm:$0xff]
      %v510 = vld [vmem:[%s400 + $0x188] sm:$0xff]
      %v511 = vld [vmem:[%s400 + $0x190] sm:$0xff]
      %v512 = vld [vmem:[%s400 + $0x198] sm:$0xff]
      %v513 = vld [vmem:[%s400 + $0x1a0] sm:$0xff]
      %v514 = vld [vmem:[%s400 + $0x1a8] sm:$0xff]
      %v515 = vld [vmem:[%s400 + $0x1b0] sm:$0xff]
      %v516 = vld [vmem:[%s400 + $0x1b8] sm:$0xff]
      %v517 = vld [vmem:[%s400 + $0x1c0] sm:$0xff]
      %v518 = vld [vmem:[%s400 + $0x1c8] sm:$0xff]
      %v519 = vld [vmem:[%s400 + $0x1d0] sm:$0xff]
      %v520 = vld [vmem:[%s400 + $0x1d8] sm:$0xff]
      %v521 = vld [vmem:[%s400 + $0x1e0] sm:$0xff]
      %v522 = vld [vmem:[%s400 + $0x1e8] sm:$0xff]
      %v523 = vld [vmem:[%s400 + $0x1f0] sm:$0xff]
      %v524 = vld [vmem:[%s400 + $0x1f8] sm:$0xff]
      %v525 = vld [vmem:[%s400 + $0x200] sm:$0xff]
      %v526 = vld [vmem:[%s400 + $0x208] sm:$0xff]
      %v527 = vld [vmem:[%s400 + $0x210] sm:$0xff]
      %v528 = vld [vmem:[%s400 + $0x218] sm:$0xff]
      %v529 = vld [vmem:[%s400 + $0x220] sm:$0xff]
      %v530 = vld [vmem:[%s400 + $0x228] sm:$0xff]
      %v531 = vld [vmem:[%s400 + $0x230] sm:$0xff]
      %v532 = vld [vmem:[%s400 + $0x238] sm:$0xff]
      %v533 = vld [vmem:[%s400 + $0x240] sm:$0xff]
      %v534 = vld [vmem:[%s400 + $0x248] sm:$0xff]
      %v535 = vld [vmem:[%s400 + $0x250] sm:$0xff]
      %v536 = vld [vmem:[%s400 + $0x258] sm:$0xff]
      %v537 = vld [vmem:[%s400 + $0x260] sm:$0xff]
      %v538 = vld [vmem:[%s400 + $0x268] sm:$0xff]
      %v539 = vld [vmem:[%s400 + $0x270] sm:$0xff]
      %v540 = vld [vmem:[%s400 + $0x278] sm:$0xff]
      %v541 = vld [vmem:[%s400 + $0x280] sm:$0xff]
      %v542 = vld [vmem:[%s400 + $0x288] sm:$0xff]
      %v543 = vld [vmem:[%s400 + $0x290] sm:$0xff]
      %v544 = vld [vmem:[%s400 + $0x298] sm:$0xff]
      %v545 = vld [vmem:[%s400 + $0x2a0] sm:$0xff]
      %v546 = vld [vmem:[%s400 + $0x2a8] sm:$0xff]
      %v547 = vld [vmem:[%s400 + $0x2b0] sm:$0xff]
      %v548 = vld [vmem:[%s400 + $0x2b8] sm:$0xff]
      %v549 = vld [vmem:[%s400 + $0x2c0] sm:$0xff]
      %v550 = vld [vmem:[%s400 + $0x2c8] sm:$0xff]
      %v551 = vld [vmem:[%s400 + $0x2d0] sm:$0xff]
      %v552 = vld [vmem:[%s400 + $0x2d8] sm:$0xff]
      %v553 = vld [vmem:[%s400 + $0x2e0] sm:$0xff]
      %v554 = vld [vmem:[%s400 + $0x2e8] sm:$0xff]
      %v555 = vld [vmem:[%s400 + $0x2f0] sm:$0xff]
      %v556 = vld [vmem:[%s400 + $0x2f8] sm:$0xff]
      %557 = vmatpush.msra.mxu0 %v551
      %558 = vmatpush.msra.mxu0 %v545
      %559 = vmatpush.msra.mxu0 %v539
      %560 = vmatpush.msra.mxu0 %v533
      %561 = vmatpush.msra.mxu0 %v527
      %562 = vmatpush.msra.mxu0 %v521
      %563 = vmatpush.msra.mxu0 %v515
      %564 = vmatpush.msra.mxu0 %v509
      %565 = vmatpush.msra.mxu0 %v503
      %566 = vmatpush.msra.mxu0 %v497
      %567 = vmatpush.msra.mxu0 %v491
      %568 = vmatpush.msra.mxu0 %v485
      %569 = vmatpush.msra.mxu0 %v479
      %570 = vmatpush.msra.mxu0 %v473
      %571 = vmatpush.msra.mxu0 %v467
      %572 = vmatpush.msra.mxu0 %v461
      %573 = vmatmul.f32.gmra.mxu0 %v459
      %v574 = vpop.f32.mrf.mxu0
      %v575 = vadd.f32 0.0, %v574
      %576 = vdwg.mxu0
      %577 = vmatpush.msra.mxu0 %v552
      %578 = vmatpush.msra.mxu0 %v546
      %579 = vmatpush.msra.mxu0 %v540
      %580 = vmatpush.msra.mxu0 %v534
      %581 = vmatpush.msra.mxu0 %v528
      %582 = vmatpush.msra.mxu0 %v522
      %583 = vmatpush.msra.mxu0 %v516
      %584 = vmatpush.msra.mxu0 %v510
      %585 = vmatpush.msra.mxu0 %v504
      %586 = vmatpush.msra.mxu0 %v498
      %587 = vmatpush.msra.mxu0 %v492
      %588 = vmatpush.msra.mxu0 %v486
      %589 = vmatpush.msra.mxu0 %v480
      %590 = vmatpush.msra.mxu0 %v474
      %591 = vmatpush.msra.mxu0 %v468
      %592 = vmatpush.msra.mxu0 %v462
      %593 = vmatmul.f32.gmra.mxu0 %v459
      %v594 = vpop.f32.mrf.mxu0
      %v595 = vadd.f32 0.0, %v594
      %596 = vdwg.mxu0
      %597 = vmatpush.msra.mxu0 %v553
      %598 = vmatpush.msra.mxu0 %v547
      %599 = vmatpush.msra.mxu0 %v541
      %600 = vmatpush.msra.mxu0 %v535
      %601 = vmatpush.msra.mxu0 %v529
      %602 = vmatpush.msra.mxu0 %v523
      %603 = vmatpush.msra.mxu0 %v517
      %604 = vmatpush.msra.mxu0 %v511
      %605 = vmatpush.msra.mxu0 %v505
      %606 = vmatpush.msra.mxu0 %v499
      %607 = vmatpush.msra.mxu0 %v493
      %608 = vmatpush.msra.mxu0 %v487
      %609 = vmatpush.msra.mxu0 %v481
      %610 = vmatpush.msra.mxu0 %v475
      %611 = vmatpush.msra.mxu0 %v469
      %612 = vmatpush.msra.mxu0 %v463
      %613 = vmatmul.f32.gmra.mxu0 %v459
      %v614 = vpop.f32.mrf.mxu0
      %v615 = vadd.f32 0.0, %v614
      %616 = vdwg.mxu0
      %617 = vmatpush.msra.mxu0 %v554
      %618 = vmatpush.msra.mxu0 %v548
      %619 = vmatpush.msra.mxu0 %v542
      %620 = vmatpush.msra.mxu0 %v536
      %621 = vmatpush.msra.mxu0 %v530
      %622 = vmatpush.msra.mxu0 %v524
      %623 = vmatpush.msra.mxu0 %v518
      %624 = vmatpush.msra.mxu0 %v512
      %625 = vmatpush.msra.mxu0 %v506
      %626 = vmatpush.msra.mxu0 %v500
      %627 = vmatpush.msra.mxu0 %v494
      %628 = vmatpush.msra.mxu0 %v488
      %629 = vmatpush.msra.mxu0 %v482
      %630 = vmatpush.msra.mxu0 %v476
      %631 = vmatpush.msra.mxu0 %v470
      %632 = vmatpush.msra.mxu0 %v464
      %633 = vmatmul.f32.gmra.mxu0 %v459
      %v634 = vpop.f32.mrf.mxu0
      %v635 = vadd.f32 0.0, %v634
      %636 = vdwg.mxu0
      %637 = vmatpush.msra.mxu0 %v555
      %638 = vmatpush.msra.mxu0 %v549
      %639 = vmatpush.msra.mxu0 %v543
      %640 = vmatpush.msra.mxu0 %v537
      %641 = vmatpush.msra.mxu0 %v531
      %642 = vmatpush.msra.mxu0 %v525
      %643 = vmatpush.msra.mxu0 %v519
      %644 = vmatpush.msra.mxu0 %v513
      %645 = vmatpush.msra.mxu0 %v507
      %646 = vmatpush.msra.mxu0 %v501
      %647 = vmatpush.msra.mxu0 %v495
      %648 = vmatpush.msra.mxu0 %v489
      %649 = vmatpush.msra.mxu0 %v483
      %650 = vmatpush.msra.mxu0 %v477
      %651 = vmatpush.msra.mxu0 %v471
      %652 = vmatpush.msra.mxu0 %v465
      %653 = vmatmul.f32.gmra.mxu0 %v459
      %v654 = vpop.f32.mrf.mxu0
      %v655 = vadd.f32 0.0, %v654
      %656 = vdwg.mxu0
      %657 = vmatpush.msra.mxu0 %v556
      %658 = vmatpush.msra.mxu0 %v550
      %659 = vmatpush.msra.mxu0 %v544
      %660 = vmatpush.msra.mxu0 %v538
      %661 = vmatpush.msra.mxu0 %v532
      %662 = vmatpush.msra.mxu0 %v526
      %663 = vmatpush.msra.mxu0 %v520
      %664 = vmatpush.msra.mxu0 %v514
      %665 = vmatpush.msra.mxu0 %v508
      %666 = vmatpush.msra.mxu0 %v502
      %667 = vmatpush.msra.mxu0 %v496
      %668 = vmatpush.msra.mxu0 %v490
      %669 = vmatpush.msra.mxu0 %v484
      %670 = vmatpush.msra.mxu0 %v478
      %671 = vmatpush.msra.mxu0 %v472
      %672 = vmatpush.msra.mxu0 %v466
      %673 = vmatmul.f32.gmra.mxu0 %v459
      %v674 = vpop.f32.mrf.mxu0
      %v675 = vadd.f32 0.0, %v674
      %676 = vdwg.mxu0
      %v677 = vld [vmem:[%s405] sm:$0xff]
      %v678 = vld [vmem:[%s405 + $0x8] sm:$0xff]
      %v679 = vld [vmem:[%s405 + $0x10] sm:$0xff]
      %v680 = vld [vmem:[%s405 + $0x18] sm:$0xff]
      %v681 = vld [vmem:[%s405 + $0x20] sm:$0xff]
      %v682 = vld [vmem:[%s405 + $0x28] sm:$0xff]
      %v683 = vld [vmem:[%s405 + $0x30] sm:$0xff]
      %v684 = vld [vmem:[%s405 + $0x38] sm:$0xff]
      %v685 = vld [vmem:[%s405 + $0x40] sm:$0xff]
      %v686 = vld [vmem:[%s405 + $0x48] sm:$0xff]
      %v687 = vld [vmem:[%s405 + $0x50] sm:$0xff]
      %v688 = vld [vmem:[%s405 + $0x58] sm:$0xff]
      %v689 = vld [vmem:[%s405 + $0x60] sm:$0xff]
      %v690 = vld [vmem:[%s405 + $0x68] sm:$0xff]
      %v691 = vld [vmem:[%s405 + $0x70] sm:$0xff]
      %v692 = vld [vmem:[%s405 + $0x78] sm:$0xff]
      %v693 = vld [vmem:[%s405 + $0x80] sm:$0xff]
      %v694 = vld [vmem:[%s405 + $0x88] sm:$0xff]
      %v695 = vld [vmem:[%s405 + $0x90] sm:$0xff]
      %v696 = vld [vmem:[%s405 + $0x98] sm:$0xff]
      %v697 = vld [vmem:[%s405 + $0xa0] sm:$0xff]
      %v698 = vld [vmem:[%s405 + $0xa8] sm:$0xff]
      %v699 = vld [vmem:[%s405 + $0xb0] sm:$0xff]
      %v700 = vld [vmem:[%s405 + $0xb8] sm:$0xff]
      %v701 = vld [vmem:[%s405 + $0xc0] sm:$0xff]
      %v702 = vld [vmem:[%s405 + $0xc8] sm:$0xff]
      %v703 = vld [vmem:[%s405 + $0xd0] sm:$0xff]
      %v704 = vld [vmem:[%s405 + $0xd8] sm:$0xff]
      %v705 = vld [vmem:[%s405 + $0xe0] sm:$0xff]
      %v706 = vld [vmem:[%s405 + $0xe8] sm:$0xff]
      %v707 = vld [vmem:[%s405 + $0xf0] sm:$0xff]
      %v708 = vld [vmem:[%s405 + $0xf8] sm:$0xff]
      %v709 = vld [vmem:[%s415] sm:$0x1]
      %v710 = vsub.f32 %v709, 1.0
      %v711 = vmul.f32 %v710, 1e+09
      %v712 = vld [vmem:[%s408] sm:$0x1]
      %713 = vmatpush.xpose.msra.mxu0 0.0
      %714 = vmatpush.xpose.msra.mxu0 0.0
      %715 = vmatpush.xpose.msra.mxu0 0.0
      %716 = vmatpush.xpose.msra.mxu0 0.0
      %717 = vmatpush.xpose.msra.mxu0 0.0
      %718 = vmatpush.xpose.msra.mxu0 0.0
      %719 = vmatpush.xpose.msra.mxu0 0.0
      %720 = vmatpush.xpose.msra.mxu0 0.0
      %721 = vmatpush.xpose.msra.mxu0 0.0
      %722 = vmatpush.xpose.msra.mxu0 0.0
      %723 = vmatpush.xpose.msra.mxu0 0.0
      %724 = vmatpush.xpose.msra.mxu0 0.0
      %725 = vmatpush.xpose.msra.mxu0 0.0
      %726 = vmatpush.xpose.msra.mxu0 0.0
      %727 = vmatpush.xpose.msra.mxu0 0.0
      %728 = vmatpush.xpose.msra.mxu0 %v615
      %729 = vmatmul.f32.gmra.mxu0 %v575
      %v730 = vpop.f32.mrf.mxu0
      %v731 = vadd.f32 0.0, %v730
      %732 = vdwg.mxu0
      %v733 = vmul.f32 %v731, 0.25
      %v735 = vperm.slane %v711, 0
      %v737 = vadd.f32 %v733, %v735
      %vm738 = vcmask 64512
      %v739 = vsel %vm738, %v737, -inf
      %740 = vmax.xlane.f32.xlu0 %v739
      %v741 = vpop.xlane.xlu0 %740
      %v742 = vsub.f32 %v737, %v741
      %v743 = vmul.f32 %v742, 1.442695
      %v744 = vpow.pop %v743
      %v745 = vsel %vm738, %v744, 0.0
      %746 = vadd.xlane.f32.xlu0 %v745
      %v747 = vpop.xlane.xlu0 %746
      %v748 = vrcp.pop %v747
      %v749 = vmul.f32 %v744, %v748
      %v751 = vsel %vm738, %v749, 0
      %753 = vmatpush.msra.mxu0 0.0
      %754 = vmatpush.msra.mxu0 0.0
      %755 = vmatpush.msra.mxu0 0.0
      %756 = vmatpush.msra.mxu0 0.0
      %757 = vmatpush.msra.mxu0 0.0
      %758 = vmatpush.msra.mxu0 0.0
      %759 = vmatpush.msra.mxu0 0.0
      %760 = vmatpush.msra.mxu0 0.0
      %761 = vmatpush.msra.mxu0 0.0
      %762 = vmatpush.msra.mxu0 0.0
      %763 = vmatpush.msra.mxu0 0.0
      %764 = vmatpush.msra.mxu0 0.0
      %765 = vmatpush.msra.mxu0 0.0
      %766 = vmatpush.msra.mxu0 0.0
      %767 = vmatpush.msra.mxu0 0.0
      %768 = vmatpush.msra.mxu0 %v655
      %769 = vmatmul.f32.gmra.mxu0 %v751
      %v770 = vpop.f32.mrf.mxu0
      %v771 = vadd.f32 0.0, %v770
      %772 = vdwg.mxu0
      %773 = vmatpush.msra.mxu0 %v692
      %774 = vmatpush.msra.mxu0 %v691
      %775 = vmatpush.msra.mxu0 %v690
      %776 = vmatpush.msra.mxu0 %v689
      %777 = vmatpush.msra.mxu0 %v688
      %778 = vmatpush.msra.mxu0 %v687
      %779 = vmatpush.msra.mxu0 %v686
      %780 = vmatpush.msra.mxu0 %v685
      %781 = vmatpush.msra.mxu0 %v684
      %782 = vmatpush.msra.mxu0 %v683
      %783 = vmatpush.msra.mxu0 %v682
      %784 = vmatpush.msra.mxu0 %v681
      %785 = vmatpush.msra.mxu0 %v680
      %786 = vmatpush.msra.mxu0 %v679
      %787 = vmatpush.msra.mxu0 %v678
      %788 = vmatpush.msra.mxu0 %v677
      %789 = vmatmul.f32.gmra.mxu0 %v771
      %v790 = vpop.f32.mrf.mxu0
      %v791 = vadd.f32 0.0, %v790
      %792 = vdwg.mxu0
      %v794 = vperm.slane %v712, 0
      %v796 = vadd.f32 %v794, %v791
      %797 = vmatpush.xpose.msra.mxu0 0.0
      %798 = vmatpush.xpose.msra.mxu0 0.0
      %799 = vmatpush.xpose.msra.mxu0 0.0
      %800 = vmatpush.xpose.msra.mxu0 0.0
      %801 = vmatpush.xpose.msra.mxu0 0.0
      %802 = vmatpush.xpose.msra.mxu0 0.0
      %803 = vmatpush.xpose.msra.mxu0 0.0
      %804 = vmatpush.xpose.msra.mxu0 0.0
      %805 = vmatpush.xpose.msra.mxu0 0.0
      %806 = vmatpush.xpose.msra.mxu0 0.0
      %807 = vmatpush.xpose.msra.mxu0 0.0
      %808 = vmatpush.xpose.msra.mxu0 0.0
      %809 = vmatpush.xpose.msra.mxu0 0.0
      %810 = vmatpush.xpose.msra.mxu0 0.0
      %811 = vmatpush.xpose.msra.mxu0 0.0
      %812 = vmatpush.xpose.msra.mxu0 %v635
      %813 = vmatmul.f32.gmra.mxu0 %v595
      %v814 = vpop.f32.mrf.mxu0
      %v815 = vadd.f32 0.0, %v814
      %816 = vdwg.mxu0
      %v817 = vmul.f32 %v815, 0.25
      %v818 = vadd.f32 %v817, %v735
      %v819 = vsel %vm738, %v818, -inf
      %820 = vmax.xlane.f32.xlu0 %v819
      %v821 = vpop.xlane.xlu0 %820
      %v822 = vsub.f32 %v818, %v821
      %v823 = vmul.f32 %v822, 1.442695
      %v824 = vpow.pop %v823
      %v825 = vsel %vm738, %v824, 0.0
      %826 = vadd.xlane.f32.xlu0 %v825
      %v827 = vpop.xlane.xlu0 %826
      %v828 = vrcp.pop %v827
      %v829 = vmul.f32 %v824, %v828
      %v831 = vsel %vm738, %v829, 0
      %833 = vmatpush.msra.mxu0 0.0
      %834 = vmatpush.msra.mxu0 0.0
      %835 = vmatpush.msra.mxu0 0.0
      %836 = vmatpush.msra.mxu0 0.0
      %837 = vmatpush.msra.mxu0 0.0
      %838 = vmatpush.msra.mxu0 0.0
      %839 = vmatpush.msra.mxu0 0.0
      %840 = vmatpush.msra.mxu0 0.0
      %841 = vmatpush.msra.mxu0 0.0
      %842 = vmatpush.msra.mxu0 0.0
      %843 = vmatpush.msra.mxu0 0.0
      %844 = vmatpush.msra.mxu0 0.0
      %845 = vmatpush.msra.mxu0 0.0
      %846 = vmatpush.msra.mxu0 0.0
      %847 = vmatpush.msra.mxu0 0.0
      %848 = vmatpush.msra.mxu0 %v675
      %849 = vmatmul.f32.gmra.mxu0 %v831
      %v850 = vpop.f32.mrf.mxu0
      %v851 = vadd.f32 0.0, %v850
      %852 = vdwg.mxu0
      %853 = vmatpush.msra.mxu0 %v708
      %854 = vmatpush.msra.mxu0 %v707
      %855 = vmatpush.msra.mxu0 %v706
      %856 = vmatpush.msra.mxu0 %v705
      %857 = vmatpush.msra.mxu0 %v704
      %858 = vmatpush.msra.mxu0 %v703
      %859 = vmatpush.msra.mxu0 %v702
      %860 = vmatpush.msra.mxu0 %v701
      %861 = vmatpush.msra.mxu0 %v700
      %862 = vmatpush.msra.mxu0 %v699
      %863 = vmatpush.msra.mxu0 %v698
      %864 = vmatpush.msra.mxu0 %v697
      %865 = vmatpush.msra.mxu0 %v696
      %866 = vmatpush.msra.mxu0 %v695
      %867 = vmatpush.msra.mxu0 %v694
      %868 = vmatpush.msra.mxu0 %v693
      %869 = vmatmul.f32.gmra.mxu0 %v851
      %v870 = vpop.f32.mrf.mxu0
      %v871 = vadd.f32 0.0, %v870
      %872 = vdwg.mxu0
      %v873 = vadd.f32 %v796, %v871
      %v874 = vld [vmem:[%s412] sm:$0xff]
      %876 = vset.pattern.permute.xlu0 0
      %877 = vperm.xlu0 %876, %v874
      %v878 = vpop.permute.xlu0 %877
      %v880 = vmul.f32 %v873, %v878
      %881 = vst [vmem:[%s419] sm:$0xff] %v880
      %p882 = scmp.lt.s32.totalorder %s19, 1
      %s883 = scalar_select %p882, %s19, 1
      %s884 = smul.addr %s883, 8
      %s885 = scalar_lea.vmem %s8, %s884
      // Predicated region
      $region53: #{forward.5} parent=51 // pred_check
        %p886 = pneg %p245
      $region54: #{forward.5} parent=51 // pred_check_branch
        %888 = sbr.rel (%p886) target = $region56
      $region55: #{forward.5} parent=51 // pred_region
        _
      $region56: #{forward.5} parent=51 // pred_fallthru
        _
    $region52: #{forward.5} parent=5 // pred_fallthru
      _
    %p889 = scmp.le.s32.totalorder 2, %s14
    // Predicated region
    $region57: #{forward.5} parent=5 // pred_check
      %p890 = pneg %p889
    $region58: #{forward.5} parent=5 // pred_check_branch
      %892 = sbr.rel (%p890) target = $region60
    $region59: #{forward.5} parent=5 // pred_region
      %s893 = ssub.s32 %s14, 2
      // Predicated region
      $region61: #{forward.5} parent=59 // pred_check
        %p894 = pneg %p251
      $region62: #{forward.5} parent=59 // pred_check_branch
        %896 = sbr.rel (%p894) target = $region64
      $region63: #{forward.5} parent=59 // pred_region
        %p897 = scmp.lt.s32.totalorder %s20, 1
        %s898 = scalar_select %p897, %s20, 1
        %s899 = smul.addr %s898, 8
        %s900 = scalar_lea.vmem %s8, %s899
      $region64: #{forward.5} parent=59 // pred_fallthru
        _
    $region60: #{forward.5} parent=5 // pred_fallthru
      _
  $region6: #{forward.5} parent=0 // loop_footer
    %s18 = sadd.s32 1, %s14
  $region7: #{forward.5} parent=0 // loop_footer_branch
    %13 = sbr.rel target = $region3
  $region8: #{forward.5} parent=0 // loop_exit
    _

</llo_original>
